<compile_context>
chip_gen: v5e
topology: v5e:2x2
jax: 0.10.0
libtpu: 0.0.40
codegen_flags: <defaults>
</compile_context>

<pallas_src>
import functools

import jax
import jax.numpy as jnp
from jax.experimental import pallas as pl
from jax.experimental.pallas import tpu as pltpu


# ----------------------------------------------------------------------------
# Fused kernel: one batch element per grid step.
# All activations live in VMEM as (channels, rows*pitch) with constant pitch.
# ----------------------------------------------------------------------------
def _up_fused_kernel(xr_ref, sk_ref, mask_ref, wup_ref, bup_ref,
                     w1_ref, b1_ref, w2_ref, b2_ref,
                     o_ref, cat_scr, y1_scr, *, k, pitch, len1, len2, cp):
    # ---- Stage 1: ConvTranspose2d(C, C, 2, stride=2) ------------------------
    # xr is x nearest-neighbour repeated 2x2.  All four 2x2 phase weight
    # matrices are stacked into one (4*Cp, C) operand -> a single MXU matmul;
    # the per-phase results are combined with precomputed parity masks.
    res = jnp.dot(wup_ref[...], xr_ref[0],
                  preferred_element_type=jnp.float32)            # (4*Cp, L0)
    up = (mask_ref[0] * res[0 * cp:1 * cp]
          + mask_ref[1] * res[1 * cp:2 * cp]
          + mask_ref[2] * res[2 * cp:3 * cp]
          + mask_ref[3] * res[3 * cp:4 * cp])
    # fused "concat": up half + (padded) skip half share one buffer whose
    # channel blocks are 8-aligned (Cp is a multiple of 8).
    cat_scr[0:cp, :] = up + bup_ref[...]                         # + bias (Cp,1)
    cat_scr[cp:2 * cp, :] = sk_ref[0]

    # ---- Stage 2: Conv2d(2C -> O1, kxk, valid) + ReLU (concat fused) --------
    # In-kernel im2col: k*k shifted matmuls over the concat buffer.
    n_o1 = y1_scr.shape[0]
    acc1 = jnp.zeros((n_o1, len1), jnp.float32)
    for di in range(k):
        for dj in range(k):
            s0 = di * pitch + dj
            acc1 = acc1 + jnp.dot(w1_ref[di, dj],
                                  cat_scr[:, s0:s0 + len1],
                                  preferred_element_type=jnp.float32)
    y1_scr[...] = jnp.maximum(acc1 + b1_ref[...], 0.0)

    # ---- Stage 3: Conv2d(O1 -> O2, kxk, valid) + ReLU -----------------------
    n_o2 = o_ref.shape[1]
    acc2 = jnp.zeros((n_o2, len2), jnp.float32)
    for di in range(k):
        for dj in range(k):
            s0 = di * pitch + dj
            acc2 = acc2 + jnp.dot(w2_ref[di, dj],
                                  y1_scr[:, s0:s0 + len2],
                                  preferred_element_type=jnp.float32)
    o_ref[0] = jnp.maximum(acc2 + b2_ref[...], 0.0).astype(o_ref.dtype)


# ----------------------------------------------------------------------------
# Up.forward wrapper.
# ----------------------------------------------------------------------------
def up_forward(params, x, skip_connection):
    N, C, H, W = x.shape
    up_w, up_b = params["up_w"], params["up_b"]
    c1_w, c1_b = params["c1_w"], params["c1_b"]
    c2_w, c2_b = params["c2_w"], params["c2_b"]

    assert up_w.shape[:2] == (C, C) and up_w.shape[2:] == (2, 2)
    O1, C2x, k, _ = c1_w.shape
    O2 = c2_w.shape[0]
    assert C2x == 2 * C and c2_w.shape[1] == O1

    Hu, Wu = 2 * H, 2 * W            # up-sampled spatial
    pitch = Wu                       # constant row pitch for all stages
    H1, W1 = Hu - (k - 1), Wu - (k - 1)
    H2, W2 = H1 - (k - 1), W1 - (k - 1)
    L0 = (Hu + 2) * pitch            # up/skip buffers: 2 zero pad rows
    len1 = (H1 + 1) * pitch          # conv1 buffer: 1 extra (garbage) row
    len2 = H2 * pitch
    Cp = ((C + 7) // 8) * 8          # sublane-aligned channel block

    # --- thin XLA layout prep (pure data movement on small tensors) ---------
    # nearest-neighbour repeat of x (replaces a post-matmul 6-D scatter)
    xr = jnp.repeat(jnp.repeat(x, 2, axis=2), 2, axis=3)              # (N,C,Hu,Wu)
    xr = jnp.pad(xr, ((0, 0), (0, 0), (0, 2), (0, 0))).reshape(N, C, L0)

    # centre-crop the skip connection; pad channels to Cp for aligned concat
    dh = skip_connection.shape[2] - Hu
    dw = skip_connection.shape[3] - Wu
    sk = skip_connection[:, :, dh // 2:dh // 2 + Hu, dw // 2:dw // 2 + Wu]
    sk = jnp.pad(sk, ((0, 0), (0, Cp - C), (0, 2), (0, 0))).reshape(N, Cp, L0)

    # parity masks for the stride-2 transposed conv (tiny, DMA'd once)
    pos = jnp.arange(L0)
    rpar = (pos // pitch) % 2
    spar = pos % 2
    masks = jnp.stack(
        [((rpar == a) & (spar == b)) for a in range(2) for b in range(2)]
    ).astype(jnp.float32)[:, None, :]                                 # (4,1,L0)

    # weight re-layouts (one-time; in a real model do this at init)
    wup = jnp.transpose(up_w, (2, 3, 1, 0)).astype(jnp.float32)       # (2,2,Cout,Cin)
    wup = jnp.pad(wup, ((0, 0), (0, 0), (0, Cp - C), (0, 0)))
    wup = wup.reshape(4 * Cp, C)                                      # stacked phases
    w1u = jnp.transpose(c1_w[:, :C], (2, 3, 0, 1))                    # (k,k,O1,C) up half
    w1s = jnp.transpose(c1_w[:, C:], (2, 3, 0, 1))                    # (k,k,O1,C) skip half
    w1 = jnp.concatenate(
        [jnp.pad(w1u, ((0, 0), (0, 0), (0, 0), (0, Cp - C))),
         jnp.pad(w1s, ((0, 0), (0, 0), (0, 0), (0, Cp - C)))],
        axis=-1).astype(jnp.float32)                                  # (k,k,O1,2*Cp)
    w2 = jnp.transpose(c2_w, (2, 3, 0, 1)).astype(jnp.float32)        # (k,k,O2,O1)
    bup = jnp.pad(up_b, (0, Cp - C)).reshape(Cp, 1).astype(jnp.float32)
    b1 = c1_b.reshape(O1, 1).astype(jnp.float32)
    b2 = c2_b.reshape(O2, 1).astype(jnp.float32)

    kernel = functools.partial(_up_fused_kernel, k=k, pitch=pitch,
                               len1=len1, len2=len2, cp=Cp)

    out_flat = pl.pallas_call(
        kernel,
        out_shape=jax.ShapeDtypeStruct((N, O2, len2), jnp.float32),
        grid=(N,),
        in_specs=[
            pl.BlockSpec((1, C, L0), lambda n: (n, 0, 0)),             # x repeated
            pl.BlockSpec((1, Cp, L0), lambda n: (n, 0, 0)),            # skip (cropped, padded)
            pl.BlockSpec((4, 1, L0), lambda n: (0, 0, 0)),             # parity masks
            pl.BlockSpec((4 * Cp, C), lambda n: (0, 0)),               # W_up (phase-stacked)
            pl.BlockSpec((Cp, 1), lambda n: (0, 0)),                   # b_up
            pl.BlockSpec((k, k, O1, 2 * Cp), lambda n: (0, 0, 0, 0)),  # W1 (concat layout)
            pl.BlockSpec((O1, 1), lambda n: (0, 0)),                   # b1
            pl.BlockSpec((k, k, O2, O1), lambda n: (0, 0, 0, 0)),      # W2
            pl.BlockSpec((O2, 1), lambda n: (0, 0)),                   # b2
        ],
        out_specs=pl.BlockSpec((1, O2, len2), lambda n: (n, 0, 0)),
        scratch_shapes=[
            pltpu.VMEM((2 * Cp, L0), jnp.float32),   # concat(up, skip) activation
            pltpu.VMEM((O1, len1), jnp.float32),     # conv1 activation
        ],
        compiler_params=pltpu.CompilerParams(
            dimension_semantics=("parallel",),
            vmem_limit_bytes=32 * 1024 * 1024,
        ),
    )(xr, sk, masks, wup, bup, w1, b1, w2, b2)

    # drop the garbage right-hand columns (rows were sized exactly)
    out = out_flat.reshape(N, O2, H2, pitch)[:, :, :, :W2]
    return out


# ----------------------------------------------------------------------------
# Pure-JAX reference (no Pallas) for a correctness check.
# ----------------------------------------------------------------------------
def up_forward_ref(params, x, skip_connection):
    N, C, H, W = x.shape
    w, b = params["up_w"], params["up_b"]
    O = w.shape[1]
    out = jnp.zeros((N, O, 2 * H, 2 * W), jnp.float32)
    for a in range(2):
        for bb in range(2):
            contrib = jnp.einsum("nchw,co->nohw", x, w[:, :, a, bb]) + b[None, :, None, None]
            out = out.at[:, :, a::2, bb::2].set(contrib)
    x = out

    dx = skip_connection.shape[-2] - x.shape[-2]
    dy = skip_connection.shape[-1] - x.shape[-1]
    skip = skip_connection[:, :, dx // 2: dx // 2 + x.shape[-2], dy // 2: dy // 2 + x.shape[-1]]
    x = jnp.concatenate([x, skip], axis=1)

    def conv(x, w, b):
        y = jax.lax.conv_general_dilated(
            x, w, window_strides=(1, 1), padding="VALID",
            dimension_numbers=("NCHW", "OIHW", "NCHW"))
        return jax.nn.relu(y + b[None, :, None, None])

    x = conv(x, params["c1_w"], params["c1_b"])
    x = conv(x, params["c2_w"], params["c2_b"])
    return x


if __name__ == "__main__":
    in_channels, out_channels, ksize = 4, 8, 3
    N, H, W = 2, 8, 8                # x spatial; up-sampled to 16x16
    Hs, Ws = 18, 18                  # skip connection spatial (cropped to 16x16)

    key = jax.random.PRNGKey(0)
    k_x, k_s, k_uw, k_ub, k_1w, k_1b, k_2w, k_2b = jax.random.split(key, 8)

    x = jax.random.normal(k_x, (N, in_channels, H, W), jnp.float32)
    skip = jax.random.normal(k_s, (N, in_channels, Hs, Ws), jnp.float32)

    params = {
        # ConvTranspose2d(in_channels, in_channels, 2, stride=2): weight (Cin, Cout, 2, 2)
        "up_w": 0.1 * jax.random.normal(k_uw, (in_channels, in_channels, 2, 2), jnp.float32),
        "up_b": 0.1 * jax.random.normal(k_ub, (in_channels,), jnp.float32),
        # Conv2d(2*in_channels, out_channels, ksize): weight (O, I, k, k)
        "c1_w": 0.1 * jax.random.normal(k_1w, (out_channels, 2 * in_channels, ksize, ksize), jnp.float32),
        "c1_b": 0.1 * jax.random.normal(k_1b, (out_channels,), jnp.float32),
        # Conv2d(out_channels, out_channels, ksize)
        "c2_w": 0.1 * jax.random.normal(k_2w, (out_channels, out_channels, ksize, ksize), jnp.float32),
        "c2_b": 0.1 * jax.random.normal(k_2b, (out_channels,), jnp.float32),
    }

    out = jax.block_until_ready(up_forward(params, x, skip))
    ref = jax.block_until_ready(up_forward_ref(params, x, skip))

    expected_shape = (N, out_channels, 2 * H - 2 * (ksize - 1), 2 * W - 2 * (ksize - 1))
    assert out.shape == expected_shape, out.shape
    assert jnp.allclose(out, ref, atol=1e-4, rtol=1e-4), float(jnp.max(jnp.abs(out - ref)))
    print("KERNEL_OK")
</pallas_src>

<mosaic_0001>
module attributes {stable_mosaic.version = 11 : i64} {
  func.func @_up_fused_kernel(%arg0: i32, %arg1: memref<1x4x288xf32, #tpu.memory_space<vmem>>, %arg2: memref<1x8x288xf32, #tpu.memory_space<vmem>>, %arg3: memref<4x1x288xf32, #tpu.memory_space<vmem>>, %arg4: memref<32x4xf32, #tpu.memory_space<vmem>>, %arg5: memref<8x1xf32, #tpu.memory_space<vmem>>, %arg6: memref<3x3x8x16xf32, #tpu.memory_space<vmem>>, %arg7: memref<8x1xf32, #tpu.memory_space<vmem>>, %arg8: memref<3x3x8x8xf32, #tpu.memory_space<vmem>>, %arg9: memref<8x1xf32, #tpu.memory_space<vmem>>, %arg10: memref<1x8x192xf32, #tpu.memory_space<vmem>>, %arg11: memref<16x288xf32, #tpu.memory_space<vmem>>, %arg12: memref<8x240xf32, #tpu.memory_space<vmem>>) attributes {dimension_semantics = [#tpu.dimension_semantics<parallel>], iteration_bounds = array<i64: 2>, scalar_prefetch = 0 : i64, scratch_operands = 2 : i64, tpu.core_type = #tpu.core_type<tc>, window_params = [{transform_indices = @transform_0, window_bounds = array<i64: 1, 4, 288>}, {transform_indices = @transform_1, window_bounds = array<i64: 1, 8, 288>}, {pipeline_mode = #tpu.pipeline_mode<synchronous>, transform_indices = @transform_2, window_bounds = array<i64: 4, 1, 288>}, {pipeline_mode = #tpu.pipeline_mode<synchronous>, transform_indices = @transform_3, window_bounds = array<i64: 32, 4>}, {pipeline_mode = #tpu.pipeline_mode<synchronous>, transform_indices = @transform_4, window_bounds = array<i64: 8, 1>}, {pipeline_mode = #tpu.pipeline_mode<synchronous>, transform_indices = @transform_5, window_bounds = array<i64: 3, 3, 8, 16>}, {pipeline_mode = #tpu.pipeline_mode<synchronous>, transform_indices = @transform_6, window_bounds = array<i64: 8, 1>}, {pipeline_mode = #tpu.pipeline_mode<synchronous>, transform_indices = @transform_7, window_bounds = array<i64: 3, 3, 8, 8>}, {pipeline_mode = #tpu.pipeline_mode<synchronous>, transform_indices = @transform_8, window_bounds = array<i64: 8, 1>}, {transform_indices = @transform_9, window_bounds = array<i64: 1, 8, 192>}]} {
    %c0 = arith.constant 0 : index
    %c0_0 = arith.constant 0 : index
    %0 = vector.load %arg4[%c0, %c0_0] : memref<32x4xf32, #tpu.memory_space<vmem>>, vector<32x4xf32>
    %c0_1 = arith.constant 0 : index
    %c0_2 = arith.constant 0 : index
    %c0_3 = arith.constant 0 : index
    %1 = vector.load %arg1[%c0_1, %c0_2, %c0_3] : memref<1x4x288xf32, #tpu.memory_space<vmem>>, vector<1x4x288xf32>
    %2 = vector.shape_cast %1 : vector<1x4x288xf32> to vector<4x288xf32>
    %cst = arith.constant dense<0.000000e+00> : vector<32x288xf32>
    %3 = tpu.matmul %0, %2, %cst {dimension_numbers = #tpu.dot_dimension_numbers<[1], [0], [0], [1], [0, 0, 1, 1], [], []>} : vector<32x4xf32>, vector<4x288xf32>, vector<32x288xf32> -> vector<32x288xf32>
    %c0_4 = arith.constant 0 : index
    %c0_5 = arith.constant 0 : index
    %c0_6 = arith.constant 0 : index
    %4 = vector.load %arg3[%c0_4, %c0_5, %c0_6] : memref<4x1x288xf32, #tpu.memory_space<vmem>>, vector<1x1x288xf32>
    %5 = vector.shape_cast %4 : vector<1x1x288xf32> to vector<1x288xf32>
    %6 = vector.extract_strided_slice %3 {offsets = [0, 0], sizes = [8, 288], strides = [1, 1]} : vector<32x288xf32> to vector<8x288xf32>
    %7 = vector.broadcast %5 : vector<1x288xf32> to vector<8x288xf32>
    %8 = arith.mulf %7, %6 : vector<8x288xf32>
    %c1 = arith.constant 1 : index
    %c0_7 = arith.constant 0 : index
    %c0_8 = arith.constant 0 : index
    %9 = vector.load %arg3[%c1, %c0_7, %c0_8] : memref<4x1x288xf32, #tpu.memory_space<vmem>>, vector<1x1x288xf32>
    %10 = vector.shape_cast %9 : vector<1x1x288xf32> to vector<1x288xf32>
    %11 = vector.extract_strided_slice %3 {offsets = [8, 0], sizes = [8, 288], strides = [1, 1]} : vector<32x288xf32> to vector<8x288xf32>
    %12 = vector.broadcast %10 : vector<1x288xf32> to vector<8x288xf32>
    %13 = arith.mulf %12, %11 : vector<8x288xf32>
    %14 = arith.addf %8, %13 : vector<8x288xf32>
    %c2 = arith.constant 2 : index
    %c0_9 = arith.constant 0 : index
    %c0_10 = arith.constant 0 : index
    %15 = vector.load %arg3[%c2, %c0_9, %c0_10] : memref<4x1x288xf32, #tpu.memory_space<vmem>>, vector<1x1x288xf32>
    %16 = vector.shape_cast %15 : vector<1x1x288xf32> to vector<1x288xf32>
    %17 = vector.extract_strided_slice %3 {offsets = [16, 0], sizes = [8, 288], strides = [1, 1]} : vector<32x288xf32> to vector<8x288xf32>
    %18 = vector.broadcast %16 : vector<1x288xf32> to vector<8x288xf32>
    %19 = arith.mulf %18, %17 : vector<8x288xf32>
    %20 = arith.addf %14, %19 : vector<8x288xf32>
    %c3 = arith.constant 3 : index
    %c0_11 = arith.constant 0 : index
    %c0_12 = arith.constant 0 : index
    %21 = vector.load %arg3[%c3, %c0_11, %c0_12] : memref<4x1x288xf32, #tpu.memory_space<vmem>>, vector<1x1x288xf32>
    %22 = vector.shape_cast %21 : vector<1x1x288xf32> to vector<1x288xf32>
    %23 = vector.extract_strided_slice %3 {offsets = [24, 0], sizes = [8, 288], strides = [1, 1]} : vector<32x288xf32> to vector<8x288xf32>
    %24 = vector.broadcast %22 : vector<1x288xf32> to vector<8x288xf32>
    %25 = arith.mulf %24, %23 : vector<8x288xf32>
    %26 = arith.addf %20, %25 : vector<8x288xf32>
    %c0_13 = arith.constant 0 : index
    %c0_14 = arith.constant 0 : index
    %27 = vector.load %arg5[%c0_13, %c0_14] : memref<8x1xf32, #tpu.memory_space<vmem>>, vector<8x1xf32>
    %28 = vector.broadcast %27 : vector<8x1xf32> to vector<8x288xf32>
    %29 = arith.addf %26, %28 : vector<8x288xf32>
    %c0_15 = arith.constant 0 : index
    %c0_16 = arith.constant 0 : index
    %30 = vector.load %arg11[%c0_15, %c0_16] : memref<16x288xf32, #tpu.memory_space<vmem>>, vector<8x288xf32>
    tpu.vector_store %arg11[%c0_15, %c0_16], %29 {strides = array<i32>} : memref<16x288xf32, #tpu.memory_space<vmem>>, vector<8x288xf32>,
    %c0_17 = arith.constant 0 : index
    %c0_18 = arith.constant 0 : index
    %c0_19 = arith.constant 0 : index
    %31 = vector.load %arg2[%c0_17, %c0_18, %c0_19] : memref<1x8x288xf32, #tpu.memory_space<vmem>>, vector<1x8x288xf32>
    %32 = vector.shape_cast %31 : vector<1x8x288xf32> to vector<8x288xf32>
    %c8 = arith.constant 8 : index
    %c0_20 = arith.constant 0 : index
    %33 = vector.load %arg11[%c8, %c0_20] : memref<16x288xf32, #tpu.memory_space<vmem>>, vector<8x288xf32>
    tpu.vector_store %arg11[%c8, %c0_20], %32 {strides = array<i32>} : memref<16x288xf32, #tpu.memory_space<vmem>>, vector<8x288xf32>,
    %cst_21 = arith.constant 0.000000e+00 : f32
    %34 = vector.broadcast %cst_21 : f32 to vector<8x240xf32>
    %c0_22 = arith.constant 0 : index
    %c0_23 = arith.constant 0 : index
    %c0_24 = arith.constant 0 : index
    %c0_25 = arith.constant 0 : index
    %35 = vector.load %arg6[%c0_22, %c0_23, %c0_24, %c0_25] : memref<3x3x8x16xf32, #tpu.memory_space<vmem>>, vector<1x1x8x16xf32>
    %36 = vector.shape_cast %35 : vector<1x1x8x16xf32> to vector<8x16xf32>
    %c0_26 = arith.constant 0 : index
    %c0_27 = arith.constant 0 : index
    %37 = vector.load %arg11[%c0_26, %c0_27] : memref<16x288xf32, #tpu.memory_space<vmem>>, vector<16x240xf32>
    %cst_28 = arith.constant dense<0.000000e+00> : vector<8x240xf32>
    %38 = tpu.matmul %36, %37, %cst_28 {dimension_numbers = #tpu.dot_dimension_numbers<[1], [0], [0], [1], [0, 0, 1, 1], [], []>} : vector<8x16xf32>, vector<16x240xf32>, vector<8x240xf32> -> vector<8x240xf32>
    %39 = arith.addf %34, %38 : vector<8x240xf32>
    %c0_29 = arith.constant 0 : index
    %c1_30 = arith.constant 1 : index
    %c0_31 = arith.constant 0 : index
    %c0_32 = arith.constant 0 : index
    %40 = vector.load %arg6[%c0_29, %c1_30, %c0_31, %c0_32] : memref<3x3x8x16xf32, #tpu.memory_space<vmem>>, vector<1x1x8x16xf32>
    %41 = vector.shape_cast %40 : vector<1x1x8x16xf32> to vector<8x16xf32>
    %c0_33 = arith.constant 0 : index
    %c1_34 = arith.constant 1 : index
    %42 = vector.load %arg11[%c0_33, %c1_34] : memref<16x288xf32, #tpu.memory_space<vmem>>, vector<16x240xf32>
    %cst_35 = arith.constant dense<0.000000e+00> : vector<8x240xf32>
    %43 = tpu.matmul %41, %42, %cst_35 {dimension_numbers = #tpu.dot_dimension_numbers<[1], [0], [0], [1], [0, 0, 1, 1], [], []>} : vector<8x16xf32>, vector<16x240xf32>, vector<8x240xf32> -> vector<8x240xf32>
    %44 = arith.addf %39, %43 : vector<8x240xf32>
    %c0_36 = arith.constant 0 : index
    %c2_37 = arith.constant 2 : index
    %c0_38 = arith.constant 0 : index
    %c0_39 = arith.constant 0 : index
    %45 = vector.load %arg6[%c0_36, %c2_37, %c0_38, %c0_39] : memref<3x3x8x16xf32, #tpu.memory_space<vmem>>, vector<1x1x8x16xf32>
    %46 = vector.shape_cast %45 : vector<1x1x8x16xf32> to vector<8x16xf32>
    %c0_40 = arith.constant 0 : index
    %c2_41 = arith.constant 2 : index
    %47 = vector.load %arg11[%c0_40, %c2_41] : memref<16x288xf32, #tpu.memory_space<vmem>>, vector<16x240xf32>
    %cst_42 = arith.constant dense<0.000000e+00> : vector<8x240xf32>
    %48 = tpu.matmul %46, %47, %cst_42 {dimension_numbers = #tpu.dot_dimension_numbers<[1], [0], [0], [1], [0, 0, 1, 1], [], []>} : vector<8x16xf32>, vector<16x240xf32>, vector<8x240xf32> -> vector<8x240xf32>
    %49 = arith.addf %44, %48 : vector<8x240xf32>
    %c1_43 = arith.constant 1 : index
    %c0_44 = arith.constant 0 : index
    %c0_45 = arith.constant 0 : index
    %c0_46 = arith.constant 0 : index
    %50 = vector.load %arg6[%c1_43, %c0_44, %c0_45, %c0_46] : memref<3x3x8x16xf32, #tpu.memory_space<vmem>>, vector<1x1x8x16xf32>
    %51 = vector.shape_cast %50 : vector<1x1x8x16xf32> to vector<8x16xf32>
    %c0_47 = arith.constant 0 : index
    %c16 = arith.constant 16 : index
    %52 = vector.load %arg11[%c0_47, %c16] : memref<16x288xf32, #tpu.memory_space<vmem>>, vector<16x240xf32>
    %cst_48 = arith.constant dense<0.000000e+00> : vector<8x240xf32>
    %53 = tpu.matmul %51, %52, %cst_48 {dimension_numbers = #tpu.dot_dimension_numbers<[1], [0], [0], [1], [0, 0, 1, 1], [], []>} : vector<8x16xf32>, vector<16x240xf32>, vector<8x240xf32> -> vector<8x240xf32>
    %54 = arith.addf %49, %53 : vector<8x240xf32>
    %c1_49 = arith.constant 1 : index
    %c1_50 = arith.constant 1 : index
    %c0_51 = arith.constant 0 : index
    %c0_52 = arith.constant 0 : index
    %55 = vector.load %arg6[%c1_49, %c1_50, %c0_51, %c0_52] : memref<3x3x8x16xf32, #tpu.memory_space<vmem>>, vector<1x1x8x16xf32>
    %56 = vector.shape_cast %55 : vector<1x1x8x16xf32> to vector<8x16xf32>
    %c0_53 = arith.constant 0 : index
    %c17 = arith.constant 17 : index
    %57 = vector.load %arg11[%c0_53, %c17] : memref<16x288xf32, #tpu.memory_space<vmem>>, vector<16x240xf32>
    %cst_54 = arith.constant dense<0.000000e+00> : vector<8x240xf32>
    %58 = tpu.matmul %56, %57, %cst_54 {dimension_numbers = #tpu.dot_dimension_numbers<[1], [0], [0], [1], [0, 0, 1, 1], [], []>} : vector<8x16xf32>, vector<16x240xf32>, vector<8x240xf32> -> vector<8x240xf32>
    %59 = arith.addf %54, %58 : vector<8x240xf32>
    %c1_55 = arith.constant 1 : index
    %c2_56 = arith.constant 2 : index
    %c0_57 = arith.constant 0 : index
    %c0_58 = arith.constant 0 : index
    %60 = vector.load %arg6[%c1_55, %c2_56, %c0_57, %c0_58] : memref<3x3x8x16xf32, #tpu.memory_space<vmem>>, vector<1x1x8x16xf32>
    %61 = vector.shape_cast %60 : vector<1x1x8x16xf32> to vector<8x16xf32>
    %c0_59 = arith.constant 0 : index
    %c18 = arith.constant 18 : index
    %62 = vector.load %arg11[%c0_59, %c18] : memref<16x288xf32, #tpu.memory_space<vmem>>, vector<16x240xf32>
    %cst_60 = arith.constant dense<0.000000e+00> : vector<8x240xf32>
    %63 = tpu.matmul %61, %62, %cst_60 {dimension_numbers = #tpu.dot_dimension_numbers<[1], [0], [0], [1], [0, 0, 1, 1], [], []>} : vector<8x16xf32>, vector<16x240xf32>, vector<8x240xf32> -> vector<8x240xf32>
    %64 = arith.addf %59, %63 : vector<8x240xf32>
    %c2_61 = arith.constant 2 : index
    %c0_62 = arith.constant 0 : index
    %c0_63 = arith.constant 0 : index
    %c0_64 = arith.constant 0 : index
    %65 = vector.load %arg6[%c2_61, %c0_62, %c0_63, %c0_64] : memref<3x3x8x16xf32, #tpu.memory_space<vmem>>, vector<1x1x8x16xf32>
    %66 = vector.shape_cast %65 : vector<1x1x8x16xf32> to vector<8x16xf32>
    %c0_65 = arith.constant 0 : index
    %c32 = arith.constant 32 : index
    %67 = vector.load %arg11[%c0_65, %c32] : memref<16x288xf32, #tpu.memory_space<vmem>>, vector<16x240xf32>
    %cst_66 = arith.constant dense<0.000000e+00> : vector<8x240xf32>
    %68 = tpu.matmul %66, %67, %cst_66 {dimension_numbers = #tpu.dot_dimension_numbers<[1], [0], [0], [1], [0, 0, 1, 1], [], []>} : vector<8x16xf32>, vector<16x240xf32>, vector<8x240xf32> -> vector<8x240xf32>
    %69 = arith.addf %64, %68 : vector<8x240xf32>
    %c2_67 = arith.constant 2 : index
    %c1_68 = arith.constant 1 : index
    %c0_69 = arith.constant 0 : index
    %c0_70 = arith.constant 0 : index
    %70 = vector.load %arg6[%c2_67, %c1_68, %c0_69, %c0_70] : memref<3x3x8x16xf32, #tpu.memory_space<vmem>>, vector<1x1x8x16xf32>
    %71 = vector.shape_cast %70 : vector<1x1x8x16xf32> to vector<8x16xf32>
    %c0_71 = arith.constant 0 : index
    %c33 = arith.constant 33 : index
    %72 = vector.load %arg11[%c0_71, %c33] : memref<16x288xf32, #tpu.memory_space<vmem>>, vector<16x240xf32>
    %cst_72 = arith.constant dense<0.000000e+00> : vector<8x240xf32>
    %73 = tpu.matmul %71, %72, %cst_72 {dimension_numbers = #tpu.dot_dimension_numbers<[1], [0], [0], [1], [0, 0, 1, 1], [], []>} : vector<8x16xf32>, vector<16x240xf32>, vector<8x240xf32> -> vector<8x240xf32>
    %74 = arith.addf %69, %73 : vector<8x240xf32>
    %c2_73 = arith.constant 2 : index
    %c2_74 = arith.constant 2 : index
    %c0_75 = arith.constant 0 : index
    %c0_76 = arith.constant 0 : index
    %75 = vector.load %arg6[%c2_73, %c2_74, %c0_75, %c0_76] : memref<3x3x8x16xf32, #tpu.memory_space<vmem>>, vector<1x1x8x16xf32>
    %76 = vector.shape_cast %75 : vector<1x1x8x16xf32> to vector<8x16xf32>
    %c0_77 = arith.constant 0 : index
    %c34 = arith.constant 34 : index
    %77 = vector.load %arg11[%c0_77, %c34] : memref<16x288xf32, #tpu.memory_space<vmem>>, vector<16x240xf32>
    %cst_78 = arith.constant dense<0.000000e+00> : vector<8x240xf32>
    %78 = tpu.matmul %76, %77, %cst_78 {dimension_numbers = #tpu.dot_dimension_numbers<[1], [0], [0], [1], [0, 0, 1, 1], [], []>} : vector<8x16xf32>, vector<16x240xf32>, vector<8x240xf32> -> vector<8x240xf32>
    %79 = arith.addf %74, %78 : vector<8x240xf32>
    %c0_79 = arith.constant 0 : index
    %c0_80 = arith.constant 0 : index
    %80 = vector.load %arg7[%c0_79, %c0_80] : memref<8x1xf32, #tpu.memory_space<vmem>>, vector<8x1xf32>
    %81 = vector.broadcast %80 : vector<8x1xf32> to vector<8x240xf32>
    %82 = arith.addf %79, %81 : vector<8x240xf32>
    %cst_81 = arith.constant 0.000000e+00 : f32
    %83 = vector.broadcast %cst_81 : f32 to vector<8x240xf32>
    %84 = arith.maximumf %82, %83 : vector<8x240xf32>
    %c0_82 = arith.constant 0 : index
    %c0_83 = arith.constant 0 : index
    %85 = vector.load %arg12[%c0_82, %c0_83] : memref<8x240xf32, #tpu.memory_space<vmem>>, vector<8x240xf32>
    tpu.vector_store %arg12[%c0_82, %c0_83], %84 {strides = array<i32>} : memref<8x240xf32, #tpu.memory_space<vmem>>, vector<8x240xf32>,
    %cst_84 = arith.constant 0.000000e+00 : f32
    %86 = vector.broadcast %cst_84 : f32 to vector<8x192xf32>
    %c0_85 = arith.constant 0 : index
    %c0_86 = arith.constant 0 : index
    %c0_87 = arith.constant 0 : index
    %c0_88 = arith.constant 0 : index
    %87 = vector.load %arg8[%c0_85, %c0_86, %c0_87, %c0_88] : memref<3x3x8x8xf32, #tpu.memory_space<vmem>>, vector<1x1x8x8xf32>
    %88 = vector.shape_cast %87 : vector<1x1x8x8xf32> to vector<8x8xf32>
    %c0_89 = arith.constant 0 : index
    %c0_90 = arith.constant 0 : index
    %89 = vector.load %arg12[%c0_89, %c0_90] : memref<8x240xf32, #tpu.memory_space<vmem>>, vector<8x192xf32>
    %cst_91 = arith.constant dense<0.000000e+00> : vector<8x192xf32>
    %90 = tpu.matmul %88, %89, %cst_91 {dimension_numbers = #tpu.dot_dimension_numbers<[1], [0], [0], [1], [0, 0, 1, 1], [], []>} : vector<8x8xf32>, vector<8x192xf32>, vector<8x192xf32> -> vector<8x192xf32>
    %91 = arith.addf %86, %90 : vector<8x192xf32>
    %c0_92 = arith.constant 0 : index
    %c1_93 = arith.constant 1 : index
    %c0_94 = arith.constant 0 : index
    %c0_95 = arith.constant 0 : index
    %92 = vector.load %arg8[%c0_92, %c1_93, %c0_94, %c0_95] : memref<3x3x8x8xf32, #tpu.memory_space<vmem>>, vector<1x1x8x8xf32>
    %93 = vector.shape_cast %92 : vector<1x1x8x8xf32> to vector<8x8xf32>
    %c0_96 = arith.constant 0 : index
    %c1_97 = arith.constant 1 : index
    %94 = vector.load %arg12[%c0_96, %c1_97] : memref<8x240xf32, #tpu.memory_space<vmem>>, vector<8x192xf32>
    %cst_98 = arith.constant dense<0.000000e+00> : vector<8x192xf32>
    %95 = tpu.matmul %93, %94, %cst_98 {dimension_numbers = #tpu.dot_dimension_numbers<[1], [0], [0], [1], [0, 0, 1, 1], [], []>} : vector<8x8xf32>, vector<8x192xf32>, vector<8x192xf32> -> vector<8x192xf32>
    %96 = arith.addf %91, %95 : vector<8x192xf32>
    %c0_99 = arith.constant 0 : index
    %c2_100 = arith.constant 2 : index
    %c0_101 = arith.constant 0 : index
    %c0_102 = arith.constant 0 : index
    %97 = vector.load %arg8[%c0_99, %c2_100, %c0_101, %c0_102] : memref<3x3x8x8xf32, #tpu.memory_space<vmem>>, vector<1x1x8x8xf32>
    %98 = vector.shape_cast %97 : vector<1x1x8x8xf32> to vector<8x8xf32>
    %c0_103 = arith.constant 0 : index
    %c2_104 = arith.constant 2 : index
    %99 = vector.load %arg12[%c0_103, %c2_104] : memref<8x240xf32, #tpu.memory_space<vmem>>, vector<8x192xf32>
    %cst_105 = arith.constant dense<0.000000e+00> : vector<8x192xf32>
    %100 = tpu.matmul %98, %99, %cst_105 {dimension_numbers = #tpu.dot_dimension_numbers<[1], [0], [0], [1], [0, 0, 1, 1], [], []>} : vector<8x8xf32>, vector<8x192xf32>, vector<8x192xf32> -> vector<8x192xf32>
    %101 = arith.addf %96, %100 : vector<8x192xf32>
    %c1_106 = arith.constant 1 : index
    %c0_107 = arith.constant 0 : index
    %c0_108 = arith.constant 0 : index
    %c0_109 = arith.constant 0 : index
    %102 = vector.load %arg8[%c1_106, %c0_107, %c0_108, %c0_109] : memref<3x3x8x8xf32, #tpu.memory_space<vmem>>, vector<1x1x8x8xf32>
    %103 = vector.shape_cast %102 : vector<1x1x8x8xf32> to vector<8x8xf32>
    %c0_110 = arith.constant 0 : index
    %c16_111 = arith.constant 16 : index
    %104 = vector.load %arg12[%c0_110, %c16_111] : memref<8x240xf32, #tpu.memory_space<vmem>>, vector<8x192xf32>
    %cst_112 = arith.constant dense<0.000000e+00> : vector<8x192xf32>
    %105 = tpu.matmul %103, %104, %cst_112 {dimension_numbers = #tpu.dot_dimension_numbers<[1], [0], [0], [1], [0, 0, 1, 1], [], []>} : vector<8x8xf32>, vector<8x192xf32>, vector<8x192xf32> -> vector<8x192xf32>
    %106 = arith.addf %101, %105 : vector<8x192xf32>
    %c1_113 = arith.constant 1 : index
    %c1_114 = arith.constant 1 : index
    %c0_115 = arith.constant 0 : index
    %c0_116 = arith.constant 0 : index
    %107 = vector.load %arg8[%c1_113, %c1_114, %c0_115, %c0_116] : memref<3x3x8x8xf32, #tpu.memory_space<vmem>>, vector<1x1x8x8xf32>
    %108 = vector.shape_cast %107 : vector<1x1x8x8xf32> to vector<8x8xf32>
    %c0_117 = arith.constant 0 : index
    %c17_118 = arith.constant 17 : index
    %109 = vector.load %arg12[%c0_117, %c17_118] : memref<8x240xf32, #tpu.memory_space<vmem>>, vector<8x192xf32>
    %cst_119 = arith.constant dense<0.000000e+00> : vector<8x192xf32>
    %110 = tpu.matmul %108, %109, %cst_119 {dimension_numbers = #tpu.dot_dimension_numbers<[1], [0], [0], [1], [0, 0, 1, 1], [], []>} : vector<8x8xf32>, vector<8x192xf32>, vector<8x192xf32> -> vector<8x192xf32>
    %111 = arith.addf %106, %110 : vector<8x192xf32>
    %c1_120 = arith.constant 1 : index
    %c2_121 = arith.constant 2 : index
    %c0_122 = arith.constant 0 : index
    %c0_123 = arith.constant 0 : index
    %112 = vector.load %arg8[%c1_120, %c2_121, %c0_122, %c0_123] : memref<3x3x8x8xf32, #tpu.memory_space<vmem>>, vector<1x1x8x8xf32>
    %113 = vector.shape_cast %112 : vector<1x1x8x8xf32> to vector<8x8xf32>
    %c0_124 = arith.constant 0 : index
    %c18_125 = arith.constant 18 : index
    %114 = vector.load %arg12[%c0_124, %c18_125] : memref<8x240xf32, #tpu.memory_space<vmem>>, vector<8x192xf32>
    %cst_126 = arith.constant dense<0.000000e+00> : vector<8x192xf32>
    %115 = tpu.matmul %113, %114, %cst_126 {dimension_numbers = #tpu.dot_dimension_numbers<[1], [0], [0], [1], [0, 0, 1, 1], [], []>} : vector<8x8xf32>, vector<8x192xf32>, vector<8x192xf32> -> vector<8x192xf32>
    %116 = arith.addf %111, %115 : vector<8x192xf32>
    %c2_127 = arith.constant 2 : index
    %c0_128 = arith.constant 0 : index
    %c0_129 = arith.constant 0 : index
    %c0_130 = arith.constant 0 : index
    %117 = vector.load %arg8[%c2_127, %c0_128, %c0_129, %c0_130] : memref<3x3x8x8xf32, #tpu.memory_space<vmem>>, vector<1x1x8x8xf32>
    %118 = vector.shape_cast %117 : vector<1x1x8x8xf32> to vector<8x8xf32>
    %c0_131 = arith.constant 0 : index
    %c32_132 = arith.constant 32 : index
    %119 = vector.load %arg12[%c0_131, %c32_132] : memref<8x240xf32, #tpu.memory_space<vmem>>, vector<8x192xf32>
    %cst_133 = arith.constant dense<0.000000e+00> : vector<8x192xf32>
    %120 = tpu.matmul %118, %119, %cst_133 {dimension_numbers = #tpu.dot_dimension_numbers<[1], [0], [0], [1], [0, 0, 1, 1], [], []>} : vector<8x8xf32>, vector<8x192xf32>, vector<8x192xf32> -> vector<8x192xf32>
    %121 = arith.addf %116, %120 : vector<8x192xf32>
    %c2_134 = arith.constant 2 : index
    %c1_135 = arith.constant 1 : index
    %c0_136 = arith.constant 0 : index
    %c0_137 = arith.constant 0 : index
    %122 = vector.load %arg8[%c2_134, %c1_135, %c0_136, %c0_137] : memref<3x3x8x8xf32, #tpu.memory_space<vmem>>, vector<1x1x8x8xf32>
    %123 = vector.shape_cast %122 : vector<1x1x8x8xf32> to vector<8x8xf32>
    %c0_138 = arith.constant 0 : index
    %c33_139 = arith.constant 33 : index
    %124 = vector.load %arg12[%c0_138, %c33_139] : memref<8x240xf32, #tpu.memory_space<vmem>>, vector<8x192xf32>
    %cst_140 = arith.constant dense<0.000000e+00> : vector<8x192xf32>
    %125 = tpu.matmul %123, %124, %cst_140 {dimension_numbers = #tpu.dot_dimension_numbers<[1], [0], [0], [1], [0, 0, 1, 1], [], []>} : vector<8x8xf32>, vector<8x192xf32>, vector<8x192xf32> -> vector<8x192xf32>
    %126 = arith.addf %121, %125 : vector<8x192xf32>
    %c2_141 = arith.constant 2 : index
    %c2_142 = arith.constant 2 : index
    %c0_143 = arith.constant 0 : index
    %c0_144 = arith.constant 0 : index
    %127 = vector.load %arg8[%c2_141, %c2_142, %c0_143, %c0_144] : memref<3x3x8x8xf32, #tpu.memory_space<vmem>>, vector<1x1x8x8xf32>
    %128 = vector.shape_cast %127 : vector<1x1x8x8xf32> to vector<8x8xf32>
    %c0_145 = arith.constant 0 : index
    %c34_146 = arith.constant 34 : index
    %129 = vector.load %arg12[%c0_145, %c34_146] : memref<8x240xf32, #tpu.memory_space<vmem>>, vector<8x192xf32>
    %cst_147 = arith.constant dense<0.000000e+00> : vector<8x192xf32>
    %130 = tpu.matmul %128, %129, %cst_147 {dimension_numbers = #tpu.dot_dimension_numbers<[1], [0], [0], [1], [0, 0, 1, 1], [], []>} : vector<8x8xf32>, vector<8x192xf32>, vector<8x192xf32> -> vector<8x192xf32>
    %131 = arith.addf %126, %130 : vector<8x192xf32>
    %c0_148 = arith.constant 0 : index
    %c0_149 = arith.constant 0 : index
    %132 = vector.load %arg9[%c0_148, %c0_149] : memref<8x1xf32, #tpu.memory_space<vmem>>, vector<8x1xf32>
    %133 = vector.broadcast %132 : vector<8x1xf32> to vector<8x192xf32>
    %134 = arith.addf %131, %133 : vector<8x192xf32>
    %cst_150 = arith.constant 0.000000e+00 : f32
    %135 = vector.broadcast %cst_150 : f32 to vector<8x192xf32>
    %136 = arith.maximumf %134, %135 : vector<8x192xf32>
    %c0_151 = arith.constant 0 : index
    %c0_152 = arith.constant 0 : index
    %c0_153 = arith.constant 0 : index
    %137 = vector.load %arg10[%c0_151, %c0_152, %c0_153] : memref<1x8x192xf32, #tpu.memory_space<vmem>>, vector<1x8x192xf32>
    %138 = vector.shape_cast %137 : vector<1x8x192xf32> to vector<8x192xf32>
    %139 = vector.shape_cast %136 : vector<8x192xf32> to vector<1x8x192xf32>
    tpu.vector_store %arg10[%c0_151, %c0_152, %c0_153], %139 {strides = array<i32>} : memref<1x8x192xf32, #tpu.memory_space<vmem>>, vector<1x8x192xf32>,
    return
  }
  func.func @transform_0(%arg0: i32) -> (i32, i32, i32) {
    %c0_i32 = arith.constant 0 : i32
    %c0_i32_0 = arith.constant 0 : i32
    %c0_i32_1 = arith.constant 0 : i32
    return %arg0, %c0_i32, %c0_i32_0 : i32, i32, i32
  }
  func.func @transform_1(%arg0: i32) -> (i32, i32, i32) {
    %c0_i32 = arith.constant 0 : i32
    %c0_i32_0 = arith.constant 0 : i32
    %c0_i32_1 = arith.constant 0 : i32
    return %arg0, %c0_i32, %c0_i32_0 : i32, i32, i32
  }
  func.func @transform_2(%arg0: i32) -> (i32, i32, i32) {
    %c0_i32 = arith.constant 0 : i32
    %c0_i32_0 = arith.constant 0 : i32
    %c0_i32_1 = arith.constant 0 : i32
    %c0_i32_2 = arith.constant 0 : i32
    return %c0_i32, %c0_i32_0, %c0_i32_1 : i32, i32, i32
  }
  func.func @transform_3(%arg0: i32) -> (i32, i32) {
    %c0_i32 = arith.constant 0 : i32
    %c0_i32_0 = arith.constant 0 : i32
    %c0_i32_1 = arith.constant 0 : i32
    return %c0_i32, %c0_i32_0 : i32, i32
  }
  func.func @transform_4(%arg0: i32) -> (i32, i32) {
    %c0_i32 = arith.constant 0 : i32
    %c0_i32_0 = arith.constant 0 : i32
    %c0_i32_1 = arith.constant 0 : i32
    return %c0_i32, %c0_i32_0 : i32, i32
  }
  func.func @transform_5(%arg0: i32) -> (i32, i32, i32, i32) {
    %c0_i32 = arith.constant 0 : i32
    %c0_i32_0 = arith.constant 0 : i32
    %c0_i32_1 = arith.constant 0 : i32
    %c0_i32_2 = arith.constant 0 : i32
    %c0_i32_3 = arith.constant 0 : i32
    return %c0_i32, %c0_i32_0, %c0_i32_1, %c0_i32_2 : i32, i32, i32, i32
  }
  func.func @transform_6(%arg0: i32) -> (i32, i32) {
    %c0_i32 = arith.constant 0 : i32
    %c0_i32_0 = arith.constant 0 : i32
    %c0_i32_1 = arith.constant 0 : i32
    return %c0_i32, %c0_i32_0 : i32, i32
  }
  func.func @transform_7(%arg0: i32) -> (i32, i32, i32, i32) {
    %c0_i32 = arith.constant 0 : i32
    %c0_i32_0 = arith.constant 0 : i32
    %c0_i32_1 = arith.constant 0 : i32
    %c0_i32_2 = arith.constant 0 : i32
    %c0_i32_3 = arith.constant 0 : i32
    return %c0_i32, %c0_i32_0, %c0_i32_1, %c0_i32_2 : i32, i32, i32, i32
  }
  func.func @transform_8(%arg0: i32) -> (i32, i32) {
    %c0_i32 = arith.constant 0 : i32
    %c0_i32_0 = arith.constant 0 : i32
    %c0_i32_1 = arith.constant 0 : i32
    return %c0_i32, %c0_i32_0 : i32, i32
  }
  func.func @transform_9(%arg0: i32) -> (i32, i32, i32) {
    %c0_i32 = arith.constant 0 : i32
    %c0_i32_0 = arith.constant 0 : i32
    %c0_i32_1 = arith.constant 0 : i32
    return %arg0, %c0_i32, %c0_i32_0 : i32, i32, i32
  }
}

</mosaic_0001>

<llo_original>
// kernel: tpu_custom_call.1
$region0: #{tpu_custom_call.1}
  #allocation0 [shape = 'u32[]', space=smem, size = 0x4, offset = 0x4, fixed_abs, tag = 'smem constant byte address 0x4 - core index']
  #allocation1 [shape = 'u32[72,128]{1,0:T(1,128)}', space=vmem, size = 0x9000, scoped, tag = 'internal scratch']
  #allocation2 [shape = 'f32[16,288]{1,0:T(8,128)}', space=vmem, size = 0x6000, scoped, tag = 'scratch operand']
  #allocation3 [shape = 'f32[8,240]{1,0:T(8,128)}', space=vmem, size = 0x2000, scoped, tag = 'scratch operand']
  %s0 = inlined_call_operand.vmem [shape: f32[2,4,288], index: 0, kind: input, shape index: {}]
  %s1 = inlined_call_operand.hbm [shape: f32[2,8,288], index: 1, kind: input, shape index: {}]
  %s2 = inlined_call_operand.vmem [shape: f32[4,1,288], index: 2, kind: input, shape index: {}]
  %s3 = inlined_call_operand.vmem [shape: f32[32,4], index: 3, kind: input, shape index: {}]
  %s4 = inlined_call_operand.vmem [shape: f32[8,1], index: 4, kind: input, shape index: {}]
  %s5 = inlined_call_operand.hbm [shape: f32[3,3,8,16], index: 5, kind: input, shape index: {}]
  %s6 = inlined_call_operand.vmem [shape: f32[8,1], index: 6, kind: input, shape index: {}]
  %s7 = inlined_call_operand.hbm [shape: f32[3,3,8,8], index: 7, kind: input, shape index: {}]
  %s8 = inlined_call_operand.vmem [shape: f32[8,1], index: 8, kind: input, shape index: {}]
  %s9 = inlined_call_operand.hbm [shape: f32[2,8,192], index: 9, kind: output, shape index: {}]
  %s10 = sld [smem:[#allocation0]]
  $region81: #{tpu_custom_call.1} parent=0
    _
  %s12 = ssub.s32 1, %s10
  %s13 = scalar_select 0, %s12, %s10
  $region1: #{tpu_custom_call.1} parent=0
    #allocation4 [shape = 'u8[24576]{0}', space=vmem, size = 0x6000, scoped, tag = 'input window, operand 1']
    #allocation5 [shape = 's32[2]{0}', space=sflag, size = 0x8, scoped, tag = 'scoped memory for tpu_custom_call.1']
    #allocation6 [shape = 's32[2]{0}', space=sflag, size = 0x8, scoped, tag = 'scoped memory for tpu_custom_call.1']
    #allocation7 [shape = 'u8[36864]{0}', space=vmem, size = 0x9000, scoped, tag = 'input window, operand 5, single buffered']
    #allocation8 [shape = 's32[1]{0}', space=sflag, size = 0x4, scoped, tag = 'scoped memory for tpu_custom_call.1']
    #allocation9 [shape = 'u8[36864]{0}', space=vmem, size = 0x9000, scoped, tag = 'input window, operand 7, single buffered']
    #allocation10 [shape = 'u8[16384]{0}', space=vmem, size = 0x4000, scoped, tag = 'output window, operand 0']
    %14 = vsyncpa [#allocation5], 0
    %s15 = scalar_lea.sflag [#allocation5], 1
    %16 = vsyncpa %s15, 0
    %17 = vsyncpa [#allocation8], 0
    %18 = vsyncpa [#allocation6], 0
    %s19 = scalar_lea.sflag [#allocation6], 1
    %20 = vsyncpa %s19, 0
    loop: start=0, step=1, limit=4
    $region2: #{tpu_custom_call.1} parent=1 // loop_pre_header
      _
    $region3: #{tpu_custom_call.1} parent=1 // loop_header
      %s22 = sphi 0, %s26
      %p23 = scmp.ge.s32.totalorder %s22, 4
      %s32 = sphi 0, %s34
      %s35 = sphi 0, %s32
      %s36 = sphi 0, %s35
      %s52 = sphi 0, %s36
      %s58 = sphi 0, %s60
      %s61 = sphi 0, %s58
      %s62 = sphi 0, %s61
      %s78 = sphi 0, %s62
      %s82 = sphi 0, %s82
      %s84 = sphi 0, %s82
      %s85 = sphi 0, %s84
      %s99 = sphi 0, %s85
      %s103 = sphi 0, %s103
      %s105 = sphi 0, %s103
      %s106 = sphi 0, %s105
      %s120 = sphi 0, %s106
      %s124 = sphi 0, %s124
      %s126 = sphi 0, %s124
      %s127 = sphi 0, %s126
      %s141 = sphi 0, %s127
      %s145 = sphi 0, %s145
      %s147 = sphi 0, %s145
      %s148 = sphi 0, %s147
      %s162 = sphi 0, %s148
      %s166 = sphi 0, %s166
      %s168 = sphi 0, %s166
      %s169 = sphi 0, %s168
      %s183 = sphi 0, %s169
      %s187 = sphi 0, %s187
      %s189 = sphi 0, %s187
      %s190 = sphi 0, %s189
      %s204 = sphi 0, %s190
      %s208 = sphi 0, %s208
      %s210 = sphi 0, %s208
      %s211 = sphi 0, %s210
      %s225 = sphi 0, %s211
      %s231 = sphi 0, %s233
      %s234 = sphi 0, %s231
      %s235 = sphi 0, %s234
      %s251 = sphi 0, %s235
    $region4: #{tpu_custom_call.1} parent=1 // loop_header_branch
      %25 = sbr.rel (%p23) target = $region8
    $region5: #{tpu_custom_call.1} parent=1 // loop_body
      %s27 = ssub.s32 %s22, 1
      %s28 = ssub.s32 %s22, 2
      %s29 = sadd.s32 %s22, 1
      %s30 = ssub.s32 %s22, %s29
      %p31 = scmp.eq.s32.totalorder %s30, 0
      %s33 = sadd.s32 %s32, 1
      %s34 = scalar_select %p31, %s32, %s33
      %p37 = pneg %p31
      %p38 = scmp.eq.s32.totalorder %s22, 1
      %p39 = por %p37, %p38
      %p40 = scmp.ne.s32.totalorder %s32, %s35
      %p41 = scmp.eq.s32.totalorder %s22, 0
      %p42 = por %p40, %p41
      %p43 = scmp.ne.s32.totalorder %s32, %s35
      %p44 = scmp.eq.s32.totalorder %s27, 1
      %p45 = por %p43, %p44
      %p46 = scmp.ne.s32.totalorder %s35, %s36
      %p47 = scmp.eq.s32.totalorder %s27, 0
      %p48 = por %p46, %p47
      %p49 = scmp.ne.s32.totalorder %s35, %s36
      %p50 = scmp.eq.s32.totalorder %s28, 1
      %p51 = por %p49, %p50
      %p53 = scmp.ne.s32.totalorder %s36, %s52
      %p54 = scmp.eq.s32.totalorder %s28, 0
      %p55 = por %p53, %p54
      %s56 = ssub.s32 %s22, %s29
      %p57 = scmp.eq.s32.totalorder %s56, 0
      %s59 = sadd.s32 %s58, 1
      %s60 = scalar_select %p57, %s58, %s59
      %p63 = pneg %p57
      %p64 = scmp.eq.s32.totalorder %s22, 1
      %p65 = por %p63, %p64
      %p66 = scmp.ne.s32.totalorder %s58, %s61
      %p67 = scmp.eq.s32.totalorder %s22, 0
      %p68 = por %p66, %p67
      %p69 = scmp.ne.s32.totalorder %s58, %s61
      %p70 = scmp.eq.s32.totalorder %s27, 1
      %p71 = por %p69, %p70
      %p72 = scmp.ne.s32.totalorder %s61, %s62
      %p73 = scmp.eq.s32.totalorder %s27, 0
      %p74 = por %p72, %p73
      %p75 = scmp.ne.s32.totalorder %s61, %s62
      %p76 = scmp.eq.s32.totalorder %s28, 1
      %p77 = por %p75, %p76
      %p79 = scmp.ne.s32.totalorder %s62, %s78
      %p80 = scmp.eq.s32.totalorder %s28, 0
      %p81 = por %p79, %p80
      %s83 = sadd.s32 %s82, 1
      %p86 = scmp.eq.s32.totalorder %s22, 1
      %p87 = scmp.ne.s32.totalorder %s82, %s84
      %p88 = scmp.eq.s32.totalorder %s22, 0
      %p89 = por %p87, %p88
      %p90 = scmp.ne.s32.totalorder %s82, %s84
      %p91 = scmp.eq.s32.totalorder %s27, 1
      %p92 = por %p90, %p91
      %p93 = scmp.ne.s32.totalorder %s84, %s85
      %p94 = scmp.eq.s32.totalorder %s27, 0
      %p95 = por %p93, %p94
      %p96 = scmp.ne.s32.totalorder %s84, %s85
      %p97 = scmp.eq.s32.totalorder %s28, 1
      %p98 = por %p96, %p97
      %p100 = scmp.ne.s32.totalorder %s85, %s99
      %p101 = scmp.eq.s32.totalorder %s28, 0
      %p102 = por %p100, %p101
      %s104 = sadd.s32 %s103, 1
      %p107 = scmp.eq.s32.totalorder %s22, 1
      %p108 = scmp.ne.s32.totalorder %s103, %s105
      %p109 = scmp.eq.s32.totalorder %s22, 0
      %p110 = por %p108, %p109
      %p111 = scmp.ne.s32.totalorder %s103, %s105
      %p112 = scmp.eq.s32.totalorder %s27, 1
      %p113 = por %p111, %p112
      %p114 = scmp.ne.s32.totalorder %s105, %s106
      %p115 = scmp.eq.s32.totalorder %s27, 0
      %p116 = por %p114, %p115
      %p117 = scmp.ne.s32.totalorder %s105, %s106
      %p118 = scmp.eq.s32.totalorder %s28, 1
      %p119 = por %p117, %p118
      %p121 = scmp.ne.s32.totalorder %s106, %s120
      %p122 = scmp.eq.s32.totalorder %s28, 0
      %p123 = por %p121, %p122
      %s125 = sadd.s32 %s124, 1
      %p128 = scmp.eq.s32.totalorder %s22, 1
      %p129 = scmp.ne.s32.totalorder %s124, %s126
      %p130 = scmp.eq.s32.totalorder %s22, 0
      %p131 = por %p129, %p130
      %p132 = scmp.ne.s32.totalorder %s124, %s126
      %p133 = scmp.eq.s32.totalorder %s27, 1
      %p134 = por %p132, %p133
      %p135 = scmp.ne.s32.totalorder %s126, %s127
      %p136 = scmp.eq.s32.totalorder %s27, 0
      %p137 = por %p135, %p136
      %p138 = scmp.ne.s32.totalorder %s126, %s127
      %p139 = scmp.eq.s32.totalorder %s28, 1
      %p140 = por %p138, %p139
      %p142 = scmp.ne.s32.totalorder %s127, %s141
      %p143 = scmp.eq.s32.totalorder %s28, 0
      %p144 = por %p142, %p143
      %s146 = sadd.s32 %s145, 1
      %p149 = scmp.eq.s32.totalorder %s22, 1
      %p150 = scmp.ne.s32.totalorder %s145, %s147
      %p151 = scmp.eq.s32.totalorder %s22, 0
      %p152 = por %p150, %p151
      %p153 = scmp.ne.s32.totalorder %s145, %s147
      %p154 = scmp.eq.s32.totalorder %s27, 1
      %p155 = por %p153, %p154
      %p156 = scmp.ne.s32.totalorder %s147, %s148
      %p157 = scmp.eq.s32.totalorder %s27, 0
      %p158 = por %p156, %p157
      %p159 = scmp.ne.s32.totalorder %s147, %s148
      %p160 = scmp.eq.s32.totalorder %s28, 1
      %p161 = por %p159, %p160
      %p163 = scmp.ne.s32.totalorder %s148, %s162
      %p164 = scmp.eq.s32.totalorder %s28, 0
      %p165 = por %p163, %p164
      %s167 = sadd.s32 %s166, 1
      %p170 = scmp.eq.s32.totalorder %s22, 1
      %p171 = scmp.ne.s32.totalorder %s166, %s168
      %p172 = scmp.eq.s32.totalorder %s22, 0
      %p173 = por %p171, %p172
      %p174 = scmp.ne.s32.totalorder %s166, %s168
      %p175 = scmp.eq.s32.totalorder %s27, 1
      %p176 = por %p174, %p175
      %p177 = scmp.ne.s32.totalorder %s168, %s169
      %p178 = scmp.eq.s32.totalorder %s27, 0
      %p179 = por %p177, %p178
      %p180 = scmp.ne.s32.totalorder %s168, %s169
      %p181 = scmp.eq.s32.totalorder %s28, 1
      %p182 = por %p180, %p181
      %p184 = scmp.ne.s32.totalorder %s169, %s183
      %p185 = scmp.eq.s32.totalorder %s28, 0
      %p186 = por %p184, %p185
      %s188 = sadd.s32 %s187, 1
      %p191 = scmp.eq.s32.totalorder %s22, 1
      %p192 = scmp.ne.s32.totalorder %s187, %s189
      %p193 = scmp.eq.s32.totalorder %s22, 0
      %p194 = por %p192, %p193
      %p195 = scmp.ne.s32.totalorder %s187, %s189
      %p196 = scmp.eq.s32.totalorder %s27, 1
      %p197 = por %p195, %p196
      %p198 = scmp.ne.s32.totalorder %s189, %s190
      %p199 = scmp.eq.s32.totalorder %s27, 0
      %p200 = por %p198, %p199
      %p201 = scmp.ne.s32.totalorder %s189, %s190
      %p202 = scmp.eq.s32.totalorder %s28, 1
      %p203 = por %p201, %p202
      %p205 = scmp.ne.s32.totalorder %s190, %s204
      %p206 = scmp.eq.s32.totalorder %s28, 0
      %p207 = por %p205, %p206
      %s209 = sadd.s32 %s208, 1
      %p212 = scmp.eq.s32.totalorder %s22, 1
      %p213 = scmp.ne.s32.totalorder %s208, %s210
      %p214 = scmp.eq.s32.totalorder %s22, 0
      %p215 = por %p213, %p214
      %p216 = scmp.ne.s32.totalorder %s208, %s210
      %p217 = scmp.eq.s32.totalorder %s27, 1
      %p218 = por %p216, %p217
      %p219 = scmp.ne.s32.totalorder %s210, %s211
      %p220 = scmp.eq.s32.totalorder %s27, 0
      %p221 = por %p219, %p220
      %p222 = scmp.ne.s32.totalorder %s210, %s211
      %p223 = scmp.eq.s32.totalorder %s28, 1
      %p224 = por %p222, %p223
      %p226 = scmp.ne.s32.totalorder %s211, %s225
      %p227 = scmp.eq.s32.totalorder %s28, 0
      %p228 = por %p226, %p227
      %s229 = ssub.s32 %s22, %s29
      %p230 = scmp.eq.s32.totalorder %s229, 0
      %s232 = sadd.s32 %s231, 1
      %s233 = scalar_select %p230, %s231, %s232
      %p236 = pneg %p230
      %p237 = scmp.eq.s32.totalorder %s22, 1
      %p238 = por %p236, %p237
      %p239 = scmp.ne.s32.totalorder %s231, %s234
      %p240 = scmp.eq.s32.totalorder %s22, 0
      %p241 = por %p239, %p240
      %p242 = scmp.ne.s32.totalorder %s231, %s234
      %p243 = scmp.eq.s32.totalorder %s27, 1
      %p244 = por %p242, %p243
      %p245 = scmp.ne.s32.totalorder %s234, %s235
      %p246 = scmp.eq.s32.totalorder %s27, 0
      %p247 = por %p245, %p246
      %p248 = scmp.ne.s32.totalorder %s234, %s235
      %p249 = scmp.eq.s32.totalorder %s28, 1
      %p250 = por %p248, %p249
      %p252 = scmp.ne.s32.totalorder %s235, %s251
      %p253 = scmp.eq.s32.totalorder %s28, 0
      %p254 = por %p252, %p253
      %p255 = scmp.le.s32.totalorder 1, %s22
      %p256 = scmp.lt.s32.totalorder %s22, 3
      %p257 = pnand %p255, %p256
      %p258 = pneg %p257
      // Predicated region
      $region9: #{tpu_custom_call.1} parent=5 // pred_check
        _
      $region10: #{tpu_custom_call.1} parent=5 // pred_check_branch
        %260 = sbr.rel (%p257) target = $region12
      $region11: #{tpu_custom_call.1} parent=5 // pred_region
        %s261 = ssub.s32 %s22, 1
        // Predicated region
        $region13: #{tpu_custom_call.1} parent=11 // pred_check
          %p262 = pneg %p95
        $region14: #{tpu_custom_call.1} parent=11 // pred_check_branch
          %264 = sbr.rel (%p262) target = $region16
        $region15: #{tpu_custom_call.1} parent=11 // pred_region
          _
        $region16: #{tpu_custom_call.1} parent=11 // pred_fallthru
          _
        // Predicated region
        $region17: #{tpu_custom_call.1} parent=11 // pred_check
          %p265 = pneg %p116
        $region18: #{tpu_custom_call.1} parent=11 // pred_check_branch
          %267 = sbr.rel (%p265) target = $region20
        $region19: #{tpu_custom_call.1} parent=11 // pred_region
          _
        $region20: #{tpu_custom_call.1} parent=11 // pred_fallthru
          _
        // Predicated region
        $region21: #{tpu_custom_call.1} parent=11 // pred_check
          %p268 = pneg %p137
        $region22: #{tpu_custom_call.1} parent=11 // pred_check_branch
          %270 = sbr.rel (%p268) target = $region24
        $region23: #{tpu_custom_call.1} parent=11 // pred_region
          _
        $region24: #{tpu_custom_call.1} parent=11 // pred_fallthru
          _
        // Predicated region
        $region25: #{tpu_custom_call.1} parent=11 // pred_check
          %p271 = pneg %p158
        $region26: #{tpu_custom_call.1} parent=11 // pred_check_branch
          %273 = sbr.rel (%p271) target = $region28
        $region27: #{tpu_custom_call.1} parent=11 // pred_region
          %275 = vsyncadd [#allocation8], 0
          %s276 = sshll.u32 %s5, 4
          %s277 = int_to_ptr.hbm [resolvable:$true] %s276
          %s278 = sshll.u32 [#allocation7], 4
          %s279 = int_to_ptr.vmem [resolvable:$true] %s278
          %284 = dma.hbm_to_vmem [thread:$0]  %s277, 1152, %s279, [#allocation8], 128, 128, 8
        $region28: #{tpu_custom_call.1} parent=11 // pred_fallthru
          _
        // Predicated region
        $region29: #{tpu_custom_call.1} parent=11 // pred_check
          %p285 = pneg %p179
        $region30: #{tpu_custom_call.1} parent=11 // pred_check_branch
          %287 = sbr.rel (%p285) target = $region32
        $region31: #{tpu_custom_call.1} parent=11 // pred_region
          _
        $region32: #{tpu_custom_call.1} parent=11 // pred_fallthru
          _
        // Predicated region
        $region33: #{tpu_custom_call.1} parent=11 // pred_check
          %p288 = pneg %p200
        $region34: #{tpu_custom_call.1} parent=11 // pred_check_branch
          %290 = sbr.rel (%p288) target = $region36
        $region35: #{tpu_custom_call.1} parent=11 // pred_region
          %292 = vsyncadd [#allocation8], 0
          %s293 = sshll.u32 %s7, 4
          %s294 = int_to_ptr.hbm [resolvable:$true] %s293
          %s295 = sshll.u32 [#allocation9], 4
          %s296 = int_to_ptr.vmem [resolvable:$true] %s295
          %301 = dma.hbm_to_vmem [thread:$0]  %s294, 1152, %s296, [#allocation8], 128, 128, 8
        $region36: #{tpu_custom_call.1} parent=11 // pred_fallthru
          _
        // Predicated region
        $region37: #{tpu_custom_call.1} parent=11 // pred_check
          %p302 = pneg %p221
        $region38: #{tpu_custom_call.1} parent=11 // pred_check_branch
          %304 = sbr.rel (%p302) target = $region40
        $region39: #{tpu_custom_call.1} parent=11 // pred_region
          _
        $region40: #{tpu_custom_call.1} parent=11 // pred_fallthru
          _
      $region12: #{tpu_custom_call.1} parent=5 // pred_fallthru
        _
      %p305 = scmp.lt.s32.totalorder %s22, 2
      // Predicated region
      $region41: #{tpu_custom_call.1} parent=5 // pred_check
        %p306 = pneg %p305
      $region42: #{tpu_custom_call.1} parent=5 // pred_check_branch
        %308 = sbr.rel (%p306) target = $region44
      $region43: #{tpu_custom_call.1} parent=5 // pred_region
        // Predicated region
        $region45: #{tpu_custom_call.1} parent=43 // pred_check
          %p309 = pneg %p42
        $region46: #{tpu_custom_call.1} parent=43 // pred_check_branch
          %311 = sbr.rel (%p309) target = $region48
        $region47: #{tpu_custom_call.1} parent=43 // pred_region
          %p312 = scmp.lt.s32.totalorder %s22, 1
          %s313 = scalar_select %p312, %s22, 1
          %s314 = smul.addr %s313, 3
          %s315 = smul.addr %s314, 4
          %s316 = scalar_lea.vmem %s0, %s315
        $region48: #{tpu_custom_call.1} parent=43 // pred_fallthru
          _
        // Predicated region
        $region49: #{tpu_custom_call.1} parent=43 // pred_check
          %p317 = pneg %p68
        $region50: #{tpu_custom_call.1} parent=43 // pred_check_branch
          %319 = sbr.rel (%p317) target = $region52
        $region51: #{tpu_custom_call.1} parent=43 // pred_region
          %s320 = sand.u32 %s58, 1
          %s321 = scalar_lea.sflag [#allocation5], %s320
          %s322 = sand.u32 %s58, 1
          %s323 = smul.addr %s322, 24
          %s324 = scalar_lea.vmem [#allocation4], %s323
          %326 = vsyncadd %s321, 0
          %s327 = smul.addr %s22, 3
          %s328 = smul.addr %s327, 8
          %s329 = scalar_lea.hbm %s1, %s328
          %s331 = sshll.u32 %s329, 4
          %s332 = int_to_ptr.hbm [resolvable:$true] %s331
          %s333 = sshll.u32 %s324, 4
          %s334 = int_to_ptr.vmem [resolvable:$true] %s333
          %336 = dma.hbm_to_vmem [thread:$0]  %s332, 384, %s334, %s321
        $region52: #{tpu_custom_call.1} parent=43 // pred_fallthru
          _
      $region44: #{tpu_custom_call.1} parent=5 // pred_fallthru
        _
      %p337 = scmp.le.s32.totalorder 1, %s22
      %p338 = scmp.lt.s32.totalorder %s22, 3
      %p339 = pnand %p337, %p338
      %p340 = pneg %p339
      // Predicated region
      $region53: #{tpu_custom_call.1} parent=5 // pred_check
        _
      $region54: #{tpu_custom_call.1} parent=5 // pred_check_branch
        %342 = sbr.rel (%p339) target = $region56
      $region55: #{tpu_custom_call.1} parent=5 // pred_region
        %s343 = ssub.s32 %s22, 1
        %s344 = sand.u32 %s61, 1
        %s345 = scalar_lea.sflag [#allocation5], %s344
        %s346 = sand.u32 %s61, 1
        %s347 = smul.addr %s346, 24
        %s348 = scalar_lea.vmem [#allocation4], %s347
        // Predicated region
        $region57: #{tpu_custom_call.1} parent=55 // pred_check
          %p349 = pneg %p74
        $region58: #{tpu_custom_call.1} parent=55 // pred_check_branch
          %351 = sbr.rel (%p349) target = $region60
        $region59: #{tpu_custom_call.1} parent=55 // pred_region
          %353 = dma.done %s345, 384
        $region60: #{tpu_custom_call.1} parent=55 // pred_fallthru
          _
        // Predicated region
        $region61: #{tpu_custom_call.1} parent=55 // pred_check
          %p354 = pneg %p158
        $region62: #{tpu_custom_call.1} parent=55 // pred_check_branch
          %356 = sbr.rel (%p354) target = $region64
        $region63: #{tpu_custom_call.1} parent=55 // pred_region
          %358 = dma.done [#allocation8], 1152
        $region64: #{tpu_custom_call.1} parent=55 // pred_fallthru
          _
        // Predicated region
        $region65: #{tpu_custom_call.1} parent=55 // pred_check
          %p359 = pneg %p200
        $region66: #{tpu_custom_call.1} parent=55 // pred_check_branch
          %361 = sbr.rel (%p359) target = $region68
        $region67: #{tpu_custom_call.1} parent=55 // pred_region
          %363 = dma.done [#allocation8], 1152
        $region68: #{tpu_custom_call.1} parent=55 // pred_fallthru
          _
        %p364 = scmp.lt.s32.totalorder %s27, 1
        %s365 = scalar_select %p364, %s27, 1
        %s366 = smul.addr %s365, 3
        %s367 = smul.addr %s366, 4
        %s368 = scalar_lea.vmem %s0, %s367
        %p369 = pneg %p48
        %p370 = pneg %p45
        %s371 = sand.u32 %s61, 1
        %s372 = scalar_lea.sflag [#allocation5], %s371
        %s373 = sand.u32 %s61, 1
        %s374 = smul.addr %s373, 24
        %s375 = scalar_lea.vmem [#allocation4], %s374
        %p376 = pneg %p74
        %p377 = pneg %p71
        %p378 = pneg %p95
        %p379 = pneg %p92
        %p380 = pneg %p116
        %p381 = pneg %p113
        %p382 = pneg %p137
        %p383 = pneg %p134
        %p384 = pneg %p158
        %p385 = pneg %p155
        %p386 = pneg %p179
        %p387 = pneg %p176
        %p388 = pneg %p200
        %p389 = pneg %p197
        %p390 = pneg %p221
        %p391 = pneg %p218
        %p392 = pneg %p247
        %p393 = pneg %p244
        %s394 = sand.u32 %s234, 1
        %s395 = scalar_lea.sflag [#allocation6], %s394
        %s396 = sand.u32 %s234, 1
        %s397 = smul.addr %s396, 16
        %s398 = scalar_lea.vmem [#allocation10], %s397
        %p399 = scmp.lt.s32.totalorder %s27, 1
        %s400 = scalar_select %p399, %s27, 1
        %s401 = smul.addr %s400, 3
        %s402 = smul.addr %s401, 4
        %s403 = scalar_lea.vmem %s0, %s402
        %v404 = vld [vmem:[%s3] sm:$0xff]
        %v405 = vld [vmem:[%s3 + $0x8] sm:$0xff]
        %v406 = vld [vmem:[%s3 + $0x10] sm:$0xff]
        %v407 = vld [vmem:[%s3 + $0x18] sm:$0xff]
        %v408 = vld [vmem:[%s403] sm:$0xff]
        %v409 = vld [vmem:[%s403 + $0x8] sm:$0xf]
        %412 = vst [vmem:[#allocation1] ss:$2 sm:$0xff] %v408
        %s413 = scalar_lea.vmem [#allocation1], 16
        %414 = vst [vmem:[%s413] ss:$2 sm:$0xff] %v409
        %v415 = vld.sshfl [vmem:[#allocation1] sm:$0xff pattern:$0x75316420]
        %v416 = vld.sshfl [vmem:[#allocation1 + $0x8] sm:$0xff pattern:$0x75316420]
        %v417 = vld.sshfl [vmem:[#allocation1 + $0x10] sm:$0xff pattern:$0x75316420]
        %vm418 = vcmask 31744
        %v420 = vsel %vm418, %v404, 0
        %v423 = vsel %vm418, %v405, 0
        %v426 = vsel %vm418, %v406, 0
        %v429 = vsel %vm418, %v407, 0
        %vm431 = vcmask 1043456
        %v432 = vsel %vm431, %v415, 0
        %v434 = vsel %vm431, %v416, 0
        %v436 = vsel %vm431, %v417, 0
        %438 = vmatpush.msra.mxu0 0.0
        %439 = vmatpush.msra.mxu0 0.0
        %440 = vmatpush.msra.mxu0 0.0
        %441 = vmatpush.msra.mxu0 0.0
        %442 = vmatpush.msra.mxu0 0.0
        %443 = vmatpush.msra.mxu0 0.0
        %444 = vmatpush.msra.mxu0 0.0
        %445 = vmatpush.msra.mxu0 0.0
        %446 = vmatpush.msra.mxu0 0.0
        %447 = vmatpush.msra.mxu0 0.0
        %448 = vmatpush.msra.mxu0 0.0
        %449 = vmatpush.msra.mxu0 0.0
        %450 = vmatpush.msra.mxu0 0.0
        %451 = vmatpush.msra.mxu0 0.0
        %452 = vmatpush.msra.mxu0 0.0
        %453 = vmatpush.msra.mxu0 %v432
        %454 = vmatmul.f32.gmra.mxu0 %v420
        %v455 = vpop.f32.mrf.mxu0
        %v456 = vadd.f32 0.0, %v455
        %457 = vmatmul.f32.gmra.mxu0 %v423
        %v458 = vpop.f32.mrf.mxu0
        %v459 = vadd.f32 0.0, %v458
        %460 = vmatmul.f32.gmra.mxu0 %v426
        %v461 = vpop.f32.mrf.mxu0
        %v462 = vadd.f32 0.0, %v461
        %463 = vmatmul.f32.gmra.mxu0 %v429
        %v464 = vpop.f32.mrf.mxu0
        %v465 = vadd.f32 0.0, %v464
        %466 = vdwg.mxu0
        %467 = vmatpush.msra.mxu0 0.0
        %468 = vmatpush.msra.mxu0 0.0
        %469 = vmatpush.msra.mxu0 0.0
        %470 = vmatpush.msra.mxu0 0.0
        %471 = vmatpush.msra.mxu0 0.0
        %472 = vmatpush.msra.mxu0 0.0
        %473 = vmatpush.msra.mxu0 0.0
        %474 = vmatpush.msra.mxu0 0.0
        %475 = vmatpush.msra.mxu0 0.0
        %476 = vmatpush.msra.mxu0 0.0
        %477 = vmatpush.msra.mxu0 0.0
        %478 = vmatpush.msra.mxu0 0.0
        %479 = vmatpush.msra.mxu0 0.0
        %480 = vmatpush.msra.mxu0 0.0
        %481 = vmatpush.msra.mxu0 0.0
        %482 = vmatpush.msra.mxu0 %v434
        %483 = vmatmul.f32.gmra.mxu0 %v420
        %v484 = vpop.f32.mrf.mxu0
        %v485 = vadd.f32 0.0, %v484
        %486 = vmatmul.f32.gmra.mxu0 %v423
        %v487 = vpop.f32.mrf.mxu0
        %v488 = vadd.f32 0.0, %v487
        %489 = vmatmul.f32.gmra.mxu0 %v426
        %v490 = vpop.f32.mrf.mxu0
        %v491 = vadd.f32 0.0, %v490
        %492 = vmatmul.f32.gmra.mxu0 %v429
        %v493 = vpop.f32.mrf.mxu0
        %v494 = vadd.f32 0.0, %v493
        %495 = vdwg.mxu0
        %496 = vmatpush.msra.mxu0 0.0
        %497 = vmatpush.msra.mxu0 0.0
        %498 = vmatpush.msra.mxu0 0.0
        %499 = vmatpush.msra.mxu0 0.0
        %500 = vmatpush.msra.mxu0 0.0
        %501 = vmatpush.msra.mxu0 0.0
        %502 = vmatpush.msra.mxu0 0.0
        %503 = vmatpush.msra.mxu0 0.0
        %504 = vmatpush.msra.mxu0 0.0
        %505 = vmatpush.msra.mxu0 0.0
        %506 = vmatpush.msra.mxu0 0.0
        %507 = vmatpush.msra.mxu0 0.0
        %508 = vmatpush.msra.mxu0 0.0
        %509 = vmatpush.msra.mxu0 0.0
        %510 = vmatpush.msra.mxu0 0.0
        %511 = vmatpush.msra.mxu0 %v436
        %512 = vmatmul.f32.gmra.mxu0 %v420
        %v513 = vpop.f32.mrf.mxu0
        %v514 = vadd.f32 0.0, %v513
        %515 = vmatmul.f32.gmra.mxu0 %v423
        %v516 = vpop.f32.mrf.mxu0
        %v517 = vadd.f32 0.0, %v516
        %518 = vmatmul.f32.gmra.mxu0 %v426
        %v519 = vpop.f32.mrf.mxu0
        %v520 = vadd.f32 0.0, %v519
        %521 = vmatmul.f32.gmra.mxu0 %v429
        %v522 = vpop.f32.mrf.mxu0
        %v523 = vadd.f32 0.0, %v522
        %524 = vdwg.mxu0
        %v525 = vld [vmem:[%s2] sm:$0x7]
        %v527 = vperm.slane %v525, 0
        %v528 = vperm.slane %v525, 1
        %v529 = vperm.slane %v525, 2
        %v533 = vmul.f32 %v527, %v456
        %v534 = vmul.f32 %v528, %v485
        %v535 = vmul.f32 %v529, %v514
        %s536 = scalar_lea.vmem %s2, 3
        %v537 = vld [vmem:[%s536] sm:$0x7]
        %v539 = vperm.slane %v537, 0
        %v540 = vperm.slane %v537, 1
        %v541 = vperm.slane %v537, 2
        %v545 = vmul.f32 %v539, %v459
        %v546 = vmul.f32 %v540, %v488
        %v547 = vmul.f32 %v541, %v517
        %v548 = vadd.f32 %v533, %v545
        %v549 = vadd.f32 %v534, %v546
        %v550 = vadd.f32 %v535, %v547
        %s551 = scalar_lea.vmem %s2, 6
        %v552 = vld [vmem:[%s551] sm:$0x7]
        %v554 = vperm.slane %v552, 0
        %v555 = vperm.slane %v552, 1
        %v556 = vperm.slane %v552, 2
        %v560 = vmul.f32 %v554, %v462
        %v561 = vmul.f32 %v555, %v491
        %v562 = vmul.f32 %v556, %v520
        %v563 = vadd.f32 %v548, %v560
        %v564 = vadd.f32 %v549, %v561
        %v565 = vadd.f32 %v550, %v562
        %s566 = scalar_lea.vmem %s2, 9
        %v567 = vld [vmem:[%s566] sm:$0x7]
        %v569 = vperm.slane %v567, 0
        %v570 = vperm.slane %v567, 1
        %v571 = vperm.slane %v567, 2
        %v575 = vmul.f32 %v569, %v465
        %v576 = vmul.f32 %v570, %v494
        %v577 = vmul.f32 %v571, %v523
        %v578 = vadd.f32 %v563, %v575
        %v579 = vadd.f32 %v564, %v576
        %v580 = vadd.f32 %v565, %v577
        %v581 = vld [vmem:[%s4] sm:$0xff]
        %583 = vset.pattern.permute.xlu0 0
        %584 = vperm.xlu0 %583, %v581
        %v585 = vpop.permute.xlu0 %584
        %v587 = vadd.f32 %v578, %v585
        %v588 = vadd.f32 %v579, %v585
        %v589 = vadd.f32 %v580, %v585
        %590 = vst [vmem:[#allocation2] sm:$0xff] %v587
        %591 = vst [vmem:[#allocation2 + $0x8] sm:$0xff] %v588
        %vm592 = vcmask 261120
        %593 = vst.msk [vmem:[#allocation2 + $0x10] sm:$0xff] %vm592, %v589
        %v594 = vld [vmem:[%s348] sm:$0xff]
        %v595 = vld [vmem:[%s348 + $0x8] sm:$0xff]
        %v596 = vld [vmem:[%s348 + $0x10] sm:$0xff]
        %597 = vst [vmem:[#allocation2 + $0x18] sm:$0xff] %v594
        %598 = vst [vmem:[#allocation2 + $0x20] sm:$0xff] %v595
        %599 = vst.msk [vmem:[#allocation2 + $0x28] sm:$0xff] %vm592, %v596
        %v600 = vld [vmem:[#allocation7] sm:$0xff]
        %v601 = vld [vmem:[#allocation2] sm:$0xff]
        %v602 = vld [vmem:[#allocation2 + $0x8] sm:$0xff]
        %v603 = vld [vmem:[#allocation2 + $0x18] sm:$0xff]
        %v604 = vld [vmem:[#allocation2 + $0x20] sm:$0xff]
        %s605 = scalar_lea.vmem [#allocation7], 8
        %v606 = vld [vmem:[%s605] sm:$0xff]
        %611 = vrot.lane.b32.xlu0 %v601, 127
        %v612 = vpop.permute.xlu0 %611
        %613 = vrot.lane.b32.xlu0 %v602, 127
        %v614 = vpop.permute.xlu0 %613
        %615 = vrot.lane.b32.xlu0 %v603, 127
        %v616 = vpop.permute.xlu0 %615
        %617 = vrot.lane.b32.xlu0 %v604, 127
        %v618 = vpop.permute.xlu0 %617
        %vm619 = vcmask 1039360
        %v620 = vsel %vm619, %v612, %v614
        %v621 = vsel %vm619, %v616, %v618
        %vm626 = vcmask 130048
        %v628 = vsel %vm626, %v606, 0
        %630 = vmatpush.msra.mxu0 0.0
        %631 = vmatpush.msra.mxu0 0.0
        %632 = vmatpush.msra.mxu0 0.0
        %633 = vmatpush.msra.mxu0 0.0
        %634 = vmatpush.msra.mxu0 0.0
        %635 = vmatpush.msra.mxu0 0.0
        %636 = vmatpush.msra.mxu0 0.0
        %637 = vmatpush.msra.mxu0 0.0
        %638 = vmatpush.msra.mxu0 0.0
        %639 = vmatpush.msra.mxu0 0.0
        %640 = vmatpush.msra.mxu0 0.0
        %641 = vmatpush.msra.mxu0 0.0
        %642 = vmatpush.msra.mxu0 0.0
        %643 = vmatpush.msra.mxu0 0.0
        %644 = vmatpush.msra.mxu0 %v621
        %645 = vmatpush.msra.mxu0 %v620
        %646 = vmatmul.f32.gmra.mxu0 %v628
        %v647 = vpop.f32.mrf.mxu0
        %v648 = vadd.f32 0.0, %v647
        %649 = vdwg.mxu0
        %650 = vmatpush.msra.mxu0 0.0
        %651 = vmatpush.msra.mxu0 0.0
        %652 = vmatpush.msra.mxu0 0.0
        %653 = vmatpush.msra.mxu0 0.0
        %654 = vmatpush.msra.mxu0 0.0
        %655 = vmatpush.msra.mxu0 0.0
        %656 = vmatpush.msra.mxu0 0.0
        %657 = vmatpush.msra.mxu0 0.0
        %658 = vmatpush.msra.mxu0 0.0
        %659 = vmatpush.msra.mxu0 0.0
        %660 = vmatpush.msra.mxu0 0.0
        %661 = vmatpush.msra.mxu0 0.0
        %662 = vmatpush.msra.mxu0 0.0
        %663 = vmatpush.msra.mxu0 0.0
        %664 = vmatpush.msra.mxu0 %v618
        %665 = vmatpush.msra.mxu0 %v614
        %666 = vmatmul.f32.gmra.mxu0 %v628
        %v667 = vpop.f32.mrf.mxu0
        %v668 = vadd.f32 0.0, %v667
        %669 = vdwg.mxu0
        %v671 = vsel %vm626, %v600, 0
        %673 = vmatpush.msra.mxu0 0.0
        %674 = vmatpush.msra.mxu0 0.0
        %675 = vmatpush.msra.mxu0 0.0
        %676 = vmatpush.msra.mxu0 0.0
        %677 = vmatpush.msra.mxu0 0.0
        %678 = vmatpush.msra.mxu0 0.0
        %679 = vmatpush.msra.mxu0 0.0
        %680 = vmatpush.msra.mxu0 0.0
        %681 = vmatpush.msra.mxu0 0.0
        %682 = vmatpush.msra.mxu0 0.0
        %683 = vmatpush.msra.mxu0 0.0
        %684 = vmatpush.msra.mxu0 0.0
        %685 = vmatpush.msra.mxu0 0.0
        %686 = vmatpush.msra.mxu0 0.0
        %687 = vmatpush.msra.mxu0 %v603
        %688 = vmatpush.msra.mxu0 %v601
        %689 = vmatmul.f32.gmra.mxu0 %v671
        %v690 = vpop.f32.mrf.mxu0
        %v691 = vadd.f32 %v648, %v690
        %692 = vdwg.mxu0
        %693 = vmatpush.msra.mxu0 0.0
        %694 = vmatpush.msra.mxu0 0.0
        %695 = vmatpush.msra.mxu0 0.0
        %696 = vmatpush.msra.mxu0 0.0
        %697 = vmatpush.msra.mxu0 0.0
        %698 = vmatpush.msra.mxu0 0.0
        %699 = vmatpush.msra.mxu0 0.0
        %700 = vmatpush.msra.mxu0 0.0
        %701 = vmatpush.msra.mxu0 0.0
        %702 = vmatpush.msra.mxu0 0.0
        %703 = vmatpush.msra.mxu0 0.0
        %704 = vmatpush.msra.mxu0 0.0
        %705 = vmatpush.msra.mxu0 0.0
        %706 = vmatpush.msra.mxu0 0.0
        %707 = vmatpush.msra.mxu0 %v604
        %708 = vmatpush.msra.mxu0 %v602
        %709 = vmatmul.f32.gmra.mxu0 %v671
        %v710 = vpop.f32.mrf.mxu0
        %v711 = vadd.f32 %v668, %v710
        %712 = vdwg.mxu0
        %s713 = scalar_lea.vmem [#allocation7], 16
        %v714 = vld [vmem:[%s713] sm:$0xff]
        %715 = vrot.lane.b32.xlu0 %v601, 126
        %v716 = vpop.permute.xlu0 %715
        %717 = vrot.lane.b32.xlu0 %v602, 126
        %v718 = vpop.permute.xlu0 %717
        %719 = vrot.lane.b32.xlu0 %v603, 126
        %v720 = vpop.permute.xlu0 %719
        %721 = vrot.lane.b32.xlu0 %v604, 126
        %v722 = vpop.permute.xlu0 %721
        %vm723 = vcmask 1031168
        %v724 = vsel %vm723, %v716, %v718
        %v725 = vsel %vm723, %v720, %v722
        %v731 = vsel %vm626, %v714, 0
        %733 = vmatpush.msra.mxu0 0.0
        %734 = vmatpush.msra.mxu0 0.0
        %735 = vmatpush.msra.mxu0 0.0
        %736 = vmatpush.msra.mxu0 0.0
        %737 = vmatpush.msra.mxu0 0.0
        %738 = vmatpush.msra.mxu0 0.0
        %739 = vmatpush.msra.mxu0 0.0
        %740 = vmatpush.msra.mxu0 0.0
        %741 = vmatpush.msra.mxu0 0.0
        %742 = vmatpush.msra.mxu0 0.0
        %743 = vmatpush.msra.mxu0 0.0
        %744 = vmatpush.msra.mxu0 0.0
        %745 = vmatpush.msra.mxu0 0.0
        %746 = vmatpush.msra.mxu0 0.0
        %747 = vmatpush.msra.mxu0 %v725
        %748 = vmatpush.msra.mxu0 %v724
        %749 = vmatmul.f32.gmra.mxu0 %v731
        %v750 = vpop.f32.mrf.mxu0
        %v751 = vadd.f32 0.0, %v750
        %752 = vdwg.mxu0
        %753 = vmatpush.msra.mxu0 0.0
        %754 = vmatpush.msra.mxu0 0.0
        %755 = vmatpush.msra.mxu0 0.0
        %756 = vmatpush.msra.mxu0 0.0
        %757 = vmatpush.msra.mxu0 0.0
        %758 = vmatpush.msra.mxu0 0.0
        %759 = vmatpush.msra.mxu0 0.0
        %760 = vmatpush.msra.mxu0 0.0
        %761 = vmatpush.msra.mxu0 0.0
        %762 = vmatpush.msra.mxu0 0.0
        %763 = vmatpush.msra.mxu0 0.0
        %764 = vmatpush.msra.mxu0 0.0
        %765 = vmatpush.msra.mxu0 0.0
        %766 = vmatpush.msra.mxu0 0.0
        %767 = vmatpush.msra.mxu0 %v722
        %768 = vmatpush.msra.mxu0 %v718
        %769 = vmatmul.f32.gmra.mxu0 %v731
        %v770 = vpop.f32.mrf.mxu0
        %v771 = vadd.f32 0.0, %v770
        %772 = vdwg.mxu0
        %v773 = vadd.f32 %v691, %v751
        %v774 = vadd.f32 %v711, %v771
        %s775 = scalar_lea.vmem [#allocation7], 24
        %v776 = vld [vmem:[%s775] sm:$0xff]
        %777 = vrot.lane.b32.xlu0 %v601, 112
        %v778 = vpop.permute.xlu0 %777
        %779 = vrot.lane.b32.xlu0 %v602, 112
        %v780 = vpop.permute.xlu0 %779
        %781 = vrot.lane.b32.xlu0 %v603, 112
        %v782 = vpop.permute.xlu0 %781
        %783 = vrot.lane.b32.xlu0 %v604, 112
        %v784 = vpop.permute.xlu0 %783
        %vm785 = vcmask 916480
        %v786 = vsel %vm785, %v778, %v780
        %v787 = vsel %vm785, %v782, %v784
        %v793 = vsel %vm626, %v776, 0
        %795 = vmatpush.msra.mxu0 0.0
        %796 = vmatpush.msra.mxu0 0.0
        %797 = vmatpush.msra.mxu0 0.0
        %798 = vmatpush.msra.mxu0 0.0
        %799 = vmatpush.msra.mxu0 0.0
        %800 = vmatpush.msra.mxu0 0.0
        %801 = vmatpush.msra.mxu0 0.0
        %802 = vmatpush.msra.mxu0 0.0
        %803 = vmatpush.msra.mxu0 0.0
        %804 = vmatpush.msra.mxu0 0.0
        %805 = vmatpush.msra.mxu0 0.0
        %806 = vmatpush.msra.mxu0 0.0
        %807 = vmatpush.msra.mxu0 0.0
        %808 = vmatpush.msra.mxu0 0.0
        %809 = vmatpush.msra.mxu0 %v787
        %810 = vmatpush.msra.mxu0 %v786
        %811 = vmatmul.f32.gmra.mxu0 %v793
        %v812 = vpop.f32.mrf.mxu0
        %v813 = vadd.f32 0.0, %v812
        %814 = vdwg.mxu0
        %815 = vmatpush.msra.mxu0 0.0
        %816 = vmatpush.msra.mxu0 0.0
        %817 = vmatpush.msra.mxu0 0.0
        %818 = vmatpush.msra.mxu0 0.0
        %819 = vmatpush.msra.mxu0 0.0
        %820 = vmatpush.msra.mxu0 0.0
        %821 = vmatpush.msra.mxu0 0.0
        %822 = vmatpush.msra.mxu0 0.0
        %823 = vmatpush.msra.mxu0 0.0
        %824 = vmatpush.msra.mxu0 0.0
        %825 = vmatpush.msra.mxu0 0.0
        %826 = vmatpush.msra.mxu0 0.0
        %827 = vmatpush.msra.mxu0 0.0
        %828 = vmatpush.msra.mxu0 0.0
        %829 = vmatpush.msra.mxu0 %v784
        %830 = vmatpush.msra.mxu0 %v780
        %831 = vmatmul.f32.gmra.mxu0 %v793
        %v832 = vpop.f32.mrf.mxu0
        %v833 = vadd.f32 0.0, %v832
        %834 = vdwg.mxu0
        %v835 = vadd.f32 %v773, %v813
        %v836 = vadd.f32 %v774, %v833
        %s837 = scalar_lea.vmem [#allocation7], 32
        %v838 = vld [vmem:[%s837] sm:$0xff]
        %v839 = vld [vmem:[#allocation2] sm:$0xff]
        %v840 = vld [vmem:[#allocation2 + $0x8] sm:$0xff]
        %v841 = vld [vmem:[#allocation2 + $0x10] sm:$0xff]
        %v842 = vld [vmem:[#allocation2 + $0x18] sm:$0xff]
        %v843 = vld [vmem:[#allocation2 + $0x20] sm:$0xff]
        %v844 = vld [vmem:[#allocation2 + $0x28] sm:$0xff]
        %851 = vrot.lane.b32.xlu0 %v839, 111
        %v852 = vpop.permute.xlu0 %851
        %853 = vrot.lane.b32.xlu0 %v840, 111
        %v854 = vpop.permute.xlu0 %853
        %855 = vrot.lane.b32.xlu0 %v841, 111
        %v856 = vpop.permute.xlu0 %855
        %857 = vrot.lane.b32.xlu0 %v842, 111
        %v858 = vpop.permute.xlu0 %857
        %859 = vrot.lane.b32.xlu0 %v843, 111
        %v860 = vpop.permute.xlu0 %859
        %861 = vrot.lane.b32.xlu0 %v844, 111
        %v862 = vpop.permute.xlu0 %861
        %vm863 = vcmask 908288
        %v864 = vsel %vm863, %v852, %v854
        %v865 = vsel %vm863, %v854, %v856
        %v866 = vsel %vm863, %v858, %v860
        %v867 = vsel %vm863, %v860, %v862
        %v873 = vsel %vm626, %v838, 0
        %875 = vmatpush.msra.mxu0 0.0
        %876 = vmatpush.msra.mxu0 0.0
        %877 = vmatpush.msra.mxu0 0.0
        %878 = vmatpush.msra.mxu0 0.0
        %879 = vmatpush.msra.mxu0 0.0
        %880 = vmatpush.msra.mxu0 0.0
        %881 = vmatpush.msra.mxu0 0.0
        %882 = vmatpush.msra.mxu0 0.0
        %883 = vmatpush.msra.mxu0 0.0
        %884 = vmatpush.msra.mxu0 0.0
        %885 = vmatpush.msra.mxu0 0.0
        %886 = vmatpush.msra.mxu0 0.0
        %887 = vmatpush.msra.mxu0 0.0
        %888 = vmatpush.msra.mxu0 0.0
        %889 = vmatpush.msra.mxu0 %v866
        %890 = vmatpush.msra.mxu0 %v864
        %891 = vmatmul.f32.gmra.mxu0 %v873
        %v892 = vpop.f32.mrf.mxu0
        %v893 = vadd.f32 0.0, %v892
        %894 = vdwg.mxu0
        %895 = vmatpush.msra.mxu0 0.0
        %896 = vmatpush.msra.mxu0 0.0
        %897 = vmatpush.msra.mxu0 0.0
        %898 = vmatpush.msra.mxu0 0.0
        %899 = vmatpush.msra.mxu0 0.0
        %900 = vmatpush.msra.mxu0 0.0
        %901 = vmatpush.msra.mxu0 0.0
        %902 = vmatpush.msra.mxu0 0.0
        %903 = vmatpush.msra.mxu0 0.0
        %904 = vmatpush.msra.mxu0 0.0
        %905 = vmatpush.msra.mxu0 0.0
        %906 = vmatpush.msra.mxu0 0.0
        %907 = vmatpush.msra.mxu0 0.0
        %908 = vmatpush.msra.mxu0 0.0
        %909 = vmatpush.msra.mxu0 %v867
        %910 = vmatpush.msra.mxu0 %v865
        %911 = vmatmul.f32.gmra.mxu0 %v873
        %v912 = vpop.f32.mrf.mxu0
        %v913 = vadd.f32 0.0, %v912
        %914 = vdwg.mxu0
        %v915 = vadd.f32 %v835, %v893
        %v916 = vadd.f32 %v836, %v913
        %s917 = scalar_lea.vmem [#allocation7], 40
        %v918 = vld [vmem:[%s917] sm:$0xff]
        %919 = vrot.lane.b32.xlu0 %v839, 110
        %v920 = vpop.permute.xlu0 %919
        %921 = vrot.lane.b32.xlu0 %v840, 110
        %v922 = vpop.permute.xlu0 %921
        %923 = vrot.lane.b32.xlu0 %v841, 110
        %v924 = vpop.permute.xlu0 %923
        %925 = vrot.lane.b32.xlu0 %v842, 110
        %v926 = vpop.permute.xlu0 %925
        %927 = vrot.lane.b32.xlu0 %v843, 110
        %v928 = vpop.permute.xlu0 %927
        %929 = vrot.lane.b32.xlu0 %v844, 110
        %v930 = vpop.permute.xlu0 %929
        %vm931 = vcmask 900096
        %v932 = vsel %vm931, %v920, %v922
        %v933 = vsel %vm931, %v922, %v924
        %v934 = vsel %vm931, %v926, %v928
        %v935 = vsel %vm931, %v928, %v930
        %v941 = vsel %vm626, %v918, 0
        %943 = vmatpush.msra.mxu0 0.0
        %944 = vmatpush.msra.mxu0 0.0
        %945 = vmatpush.msra.mxu0 0.0
        %946 = vmatpush.msra.mxu0 0.0
        %947 = vmatpush.msra.mxu0 0.0
        %948 = vmatpush.msra.mxu0 0.0
        %949 = vmatpush.msra.mxu0 0.0
        %950 = vmatpush.msra.mxu0 0.0
        %951 = vmatpush.msra.mxu0 0.0
        %952 = vmatpush.msra.mxu0 0.0
        %953 = vmatpush.msra.mxu0 0.0
        %954 = vmatpush.msra.mxu0 0.0
        %955 = vmatpush.msra.mxu0 0.0
        %956 = vmatpush.msra.mxu0 0.0
        %957 = vmatpush.msra.mxu0 %v934
        %958 = vmatpush.msra.mxu0 %v932
        %959 = vmatmul.f32.gmra.mxu0 %v941
        %v960 = vpop.f32.mrf.mxu0
        %v961 = vadd.f32 0.0, %v960
        %962 = vdwg.mxu0
        %963 = vmatpush.msra.mxu0 0.0
        %964 = vmatpush.msra.mxu0 0.0
        %965 = vmatpush.msra.mxu0 0.0
        %966 = vmatpush.msra.mxu0 0.0
        %967 = vmatpush.msra.mxu0 0.0
        %968 = vmatpush.msra.mxu0 0.0
        %969 = vmatpush.msra.mxu0 0.0
        %970 = vmatpush.msra.mxu0 0.0
        %971 = vmatpush.msra.mxu0 0.0
        %972 = vmatpush.msra.mxu0 0.0
        %973 = vmatpush.msra.mxu0 0.0
        %974 = vmatpush.msra.mxu0 0.0
        %975 = vmatpush.msra.mxu0 0.0
        %976 = vmatpush.msra.mxu0 0.0
        %977 = vmatpush.msra.mxu0 %v935
        %978 = vmatpush.msra.mxu0 %v933
        %979 = vmatmul.f32.gmra.mxu0 %v941
        %v980 = vpop.f32.mrf.mxu0
        %v981 = vadd.f32 0.0, %v980
        %982 = vdwg.mxu0
        %v983 = vadd.f32 %v915, %v961
        %v984 = vadd.f32 %v916, %v981
        %s985 = scalar_lea.vmem [#allocation7], 48
        %v986 = vld [vmem:[%s985] sm:$0xff]
        %987 = vrot.lane.b32.xlu0 %v839, 96
        %v988 = vpop.permute.xlu0 %987
        %989 = vrot.lane.b32.xlu0 %v840, 96
        %v990 = vpop.permute.xlu0 %989
        %991 = vrot.lane.b32.xlu0 %v841, 96
        %v992 = vpop.permute.xlu0 %991
        %993 = vrot.lane.b32.xlu0 %v842, 96
        %v994 = vpop.permute.xlu0 %993
        %995 = vrot.lane.b32.xlu0 %v843, 96
        %v996 = vpop.permute.xlu0 %995
        %997 = vrot.lane.b32.xlu0 %v844, 96
        %v998 = vpop.permute.xlu0 %997
        %vm999 = vcmask 785408
        %v1000 = vsel %vm999, %v988, %v990
        %v1001 = vsel %vm999, %v990, %v992
        %v1002 = vsel %vm999, %v994, %v996
        %v1003 = vsel %vm999, %v996, %v998
        %v1009 = vsel %vm626, %v986, 0
        %1011 = vmatpush.msra.mxu0 0.0
        %1012 = vmatpush.msra.mxu0 0.0
        %1013 = vmatpush.msra.mxu0 0.0
        %1014 = vmatpush.msra.mxu0 0.0
        %1015 = vmatpush.msra.mxu0 0.0
        %1016 = vmatpush.msra.mxu0 0.0
        %1017 = vmatpush.msra.mxu0 0.0
        %1018 = vmatpush.msra.mxu0 0.0
        %1019 = vmatpush.msra.mxu0 0.0
        %1020 = vmatpush.msra.mxu0 0.0
        %1021 = vmatpush.msra.mxu0 0.0
        %1022 = vmatpush.msra.mxu0 0.0
        %1023 = vmatpush.msra.mxu0 0.0
        %1024 = vmatpush.msra.mxu0 0.0
        %1025 = vmatpush.msra.mxu0 %v1002
        %1026 = vmatpush.msra.mxu0 %v1000
        %1027 = vmatmul.f32.gmra.mxu0 %v1009
        %v1028 = vpop.f32.mrf.mxu0
        %v1029 = vadd.f32 0.0, %v1028
        %1030 = vdwg.mxu0
        %1031 = vmatpush.msra.mxu0 0.0
        %1032 = vmatpush.msra.mxu0 0.0
        %1033 = vmatpush.msra.mxu0 0.0
        %1034 = vmatpush.msra.mxu0 0.0
        %1035 = vmatpush.msra.mxu0 0.0
        %1036 = vmatpush.msra.mxu0 0.0
        %1037 = vmatpush.msra.mxu0 0.0
        %1038 = vmatpush.msra.mxu0 0.0
        %1039 = vmatpush.msra.mxu0 0.0
        %1040 = vmatpush.msra.mxu0 0.0
        %1041 = vmatpush.msra.mxu0 0.0
        %1042 = vmatpush.msra.mxu0 0.0
        %1043 = vmatpush.msra.mxu0 0.0
        %1044 = vmatpush.msra.mxu0 0.0
        %1045 = vmatpush.msra.mxu0 %v1003
        %1046 = vmatpush.msra.mxu0 %v1001
        %1047 = vmatmul.f32.gmra.mxu0 %v1009
        %v1048 = vpop.f32.mrf.mxu0
        %v1049 = vadd.f32 0.0, %v1048
        %1050 = vdwg.mxu0
        %v1051 = vadd.f32 %v983, %v1029
        %v1052 = vadd.f32 %v984, %v1049
        %s1053 = scalar_lea.vmem [#allocation7], 56
        %v1054 = vld [vmem:[%s1053] sm:$0xff]
        %1055 = vrot.lane.b32.xlu0 %v839, 95
        %v1056 = vpop.permute.xlu0 %1055
        %1057 = vrot.lane.b32.xlu0 %v840, 95
        %v1058 = vpop.permute.xlu0 %1057
        %1059 = vrot.lane.b32.xlu0 %v841, 95
        %v1060 = vpop.permute.xlu0 %1059
        %1061 = vrot.lane.b32.xlu0 %v842, 95
        %v1062 = vpop.permute.xlu0 %1061
        %1063 = vrot.lane.b32.xlu0 %v843, 95
        %v1064 = vpop.permute.xlu0 %1063
        %1065 = vrot.lane.b32.xlu0 %v844, 95
        %v1066 = vpop.permute.xlu0 %1065
        %vm1067 = vcmask 777216
        %v1068 = vsel %vm1067, %v1056, %v1058
        %v1069 = vsel %vm1067, %v1058, %v1060
        %v1070 = vsel %vm1067, %v1062, %v1064
        %v1071 = vsel %vm1067, %v1064, %v1066
        %v1077 = vsel %vm626, %v1054, 0
        %1079 = vmatpush.msra.mxu0 0.0
        %1080 = vmatpush.msra.mxu0 0.0
        %1081 = vmatpush.msra.mxu0 0.0
        %1082 = vmatpush.msra.mxu0 0.0
        %1083 = vmatpush.msra.mxu0 0.0
        %1084 = vmatpush.msra.mxu0 0.0
        %1085 = vmatpush.msra.mxu0 0.0
        %1086 = vmatpush.msra.mxu0 0.0
        %1087 = vmatpush.msra.mxu0 0.0
        %1088 = vmatpush.msra.mxu0 0.0
        %1089 = vmatpush.msra.mxu0 0.0
        %1090 = vmatpush.msra.mxu0 0.0
        %1091 = vmatpush.msra.mxu0 0.0
        %1092 = vmatpush.msra.mxu0 0.0
        %1093 = vmatpush.msra.mxu0 %v1070
        %1094 = vmatpush.msra.mxu0 %v1068
        %1095 = vmatmul.f32.gmra.mxu0 %v1077
        %v1096 = vpop.f32.mrf.mxu0
        %v1097 = vadd.f32 0.0, %v1096
        %1098 = vdwg.mxu0
        %1099 = vmatpush.msra.mxu0 0.0
        %1100 = vmatpush.msra.mxu0 0.0
        %1101 = vmatpush.msra.mxu0 0.0
        %1102 = vmatpush.msra.mxu0 0.0
        %1103 = vmatpush.msra.mxu0 0.0
        %1104 = vmatpush.msra.mxu0 0.0
        %1105 = vmatpush.msra.mxu0 0.0
        %1106 = vmatpush.msra.mxu0 0.0
        %1107 = vmatpush.msra.mxu0 0.0
        %1108 = vmatpush.msra.mxu0 0.0
        %1109 = vmatpush.msra.mxu0 0.0
        %1110 = vmatpush.msra.mxu0 0.0
        %1111 = vmatpush.msra.mxu0 0.0
        %1112 = vmatpush.msra.mxu0 0.0
        %1113 = vmatpush.msra.mxu0 %v1071
        %1114 = vmatpush.msra.mxu0 %v1069
        %1115 = vmatmul.f32.gmra.mxu0 %v1077
        %v1116 = vpop.f32.mrf.mxu0
        %v1117 = vadd.f32 0.0, %v1116
        %1118 = vdwg.mxu0
        %v1119 = vadd.f32 %v1051, %v1097
        %v1120 = vadd.f32 %v1052, %v1117
        %s1121 = scalar_lea.vmem [#allocation7], 64
        %v1122 = vld [vmem:[%s1121] sm:$0xff]
        %1123 = vrot.lane.b32.xlu0 %v839, 94
        %v1124 = vpop.permute.xlu0 %1123
        %1125 = vrot.lane.b32.xlu0 %v840, 94
        %v1126 = vpop.permute.xlu0 %1125
        %1127 = vrot.lane.b32.xlu0 %v841, 94
        %v1128 = vpop.permute.xlu0 %1127
        %1129 = vrot.lane.b32.xlu0 %v842, 94
        %v1130 = vpop.permute.xlu0 %1129
        %1131 = vrot.lane.b32.xlu0 %v843, 94
        %v1132 = vpop.permute.xlu0 %1131
        %1133 = vrot.lane.b32.xlu0 %v844, 94
        %v1134 = vpop.permute.xlu0 %1133
        %vm1135 = vcmask 769024
        %v1136 = vsel %vm1135, %v1124, %v1126
        %v1137 = vsel %vm1135, %v1126, %v1128
        %v1138 = vsel %vm1135, %v1130, %v1132
        %v1139 = vsel %vm1135, %v1132, %v1134
        %v1145 = vsel %vm626, %v1122, 0
        %1147 = vmatpush.msra.mxu0 0.0
        %1148 = vmatpush.msra.mxu0 0.0
        %1149 = vmatpush.msra.mxu0 0.0
        %1150 = vmatpush.msra.mxu0 0.0
        %1151 = vmatpush.msra.mxu0 0.0
        %1152 = vmatpush.msra.mxu0 0.0
        %1153 = vmatpush.msra.mxu0 0.0
        %1154 = vmatpush.msra.mxu0 0.0
        %1155 = vmatpush.msra.mxu0 0.0
        %1156 = vmatpush.msra.mxu0 0.0
        %1157 = vmatpush.msra.mxu0 0.0
        %1158 = vmatpush.msra.mxu0 0.0
        %1159 = vmatpush.msra.mxu0 0.0
        %1160 = vmatpush.msra.mxu0 0.0
        %1161 = vmatpush.msra.mxu0 %v1138
        %1162 = vmatpush.msra.mxu0 %v1136
        %1163 = vmatmul.f32.gmra.mxu0 %v1145
        %v1164 = vpop.f32.mrf.mxu0
        %v1165 = vadd.f32 0.0, %v1164
        %1166 = vdwg.mxu0
        %1167 = vmatpush.msra.mxu0 0.0
        %1168 = vmatpush.msra.mxu0 0.0
        %1169 = vmatpush.msra.mxu0 0.0
        %1170 = vmatpush.msra.mxu0 0.0
        %1171 = vmatpush.msra.mxu0 0.0
        %1172 = vmatpush.msra.mxu0 0.0
        %1173 = vmatpush.msra.mxu0 0.0
        %1174 = vmatpush.msra.mxu0 0.0
        %1175 = vmatpush.msra.mxu0 0.0
        %1176 = vmatpush.msra.mxu0 0.0
        %1177 = vmatpush.msra.mxu0 0.0
        %1178 = vmatpush.msra.mxu0 0.0
        %1179 = vmatpush.msra.mxu0 0.0
        %1180 = vmatpush.msra.mxu0 0.0
        %1181 = vmatpush.msra.mxu0 %v1139
        %1182 = vmatpush.msra.mxu0 %v1137
        %1183 = vmatmul.f32.gmra.mxu0 %v1145
        %v1184 = vpop.f32.mrf.mxu0
        %v1185 = vadd.f32 0.0, %v1184
        %1186 = vdwg.mxu0
        %v1187 = vadd.f32 %v1119, %v1165
        %v1188 = vadd.f32 %v1120, %v1185
        %v1189 = vld [vmem:[%s6] sm:$0xff]
        %1191 = vset.pattern.permute.xlu0 0
        %1192 = vperm.xlu0 %1191, %v1189
        %v1193 = vpop.permute.xlu0 %1192
        %v1195 = vadd.f32 %v1187, %v1193
        %v1196 = vadd.f32 %v1188, %v1193
        %v1197 = vmax.f32 %v1195, 0.0
        %v1198 = vmax.f32 %v1196, 0.0
        %1199 = vst [vmem:[#allocation3] sm:$0xff] %v1197
        %1200 = vst.msk [vmem:[#allocation3 + $0x8] sm:$0xff] %vm785, %v1198
        %v1201 = vld [vmem:[#allocation9] sm:$0xff]
        %v1202 = vld [vmem:[#allocation3] sm:$0xff]
        %v1203 = vld [vmem:[#allocation3 + $0x8] sm:$0xff]
        %s1204 = scalar_lea.vmem [#allocation9], 8
        %v1205 = vld [vmem:[%s1204] sm:$0xff]
        %1208 = vrot.lane.b32.xlu0 %v1202, 127
        %v1209 = vpop.permute.xlu0 %1208
        %1210 = vrot.lane.b32.xlu0 %v1203, 127
        %v1211 = vpop.permute.xlu0 %1210
        %v1212 = vsel %vm619, %v1209, %v1211
        %vm1215 = vcmask 64512
        %v1217 = vsel %vm1215, %v1205, 0
        %1219 = vmatpush.msra.mxu0 0.0
        %1220 = vmatpush.msra.mxu0 0.0
        %1221 = vmatpush.msra.mxu0 0.0
        %1222 = vmatpush.msra.mxu0 0.0
        %1223 = vmatpush.msra.mxu0 0.0
        %1224 = vmatpush.msra.mxu0 0.0
        %1225 = vmatpush.msra.mxu0 0.0
        %1226 = vmatpush.msra.mxu0 0.0
        %1227 = vmatpush.msra.mxu0 0.0
        %1228 = vmatpush.msra.mxu0 0.0
        %1229 = vmatpush.msra.mxu0 0.0
        %1230 = vmatpush.msra.mxu0 0.0
        %1231 = vmatpush.msra.mxu0 0.0
        %1232 = vmatpush.msra.mxu0 0.0
        %1233 = vmatpush.msra.mxu0 0.0
        %1234 = vmatpush.msra.mxu0 %v1212
        %1235 = vmatmul.f32.gmra.mxu0 %v1217
        %v1236 = vpop.f32.mrf.mxu0
        %v1237 = vadd.f32 0.0, %v1236
        %1238 = vdwg.mxu0
        %1239 = vmatpush.msra.mxu0 0.0
        %1240 = vmatpush.msra.mxu0 0.0
        %1241 = vmatpush.msra.mxu0 0.0
        %1242 = vmatpush.msra.mxu0 0.0
        %1243 = vmatpush.msra.mxu0 0.0
        %1244 = vmatpush.msra.mxu0 0.0
        %1245 = vmatpush.msra.mxu0 0.0
        %1246 = vmatpush.msra.mxu0 0.0
        %1247 = vmatpush.msra.mxu0 0.0
        %1248 = vmatpush.msra.mxu0 0.0
        %1249 = vmatpush.msra.mxu0 0.0
        %1250 = vmatpush.msra.mxu0 0.0
        %1251 = vmatpush.msra.mxu0 0.0
        %1252 = vmatpush.msra.mxu0 0.0
        %1253 = vmatpush.msra.mxu0 0.0
        %1254 = vmatpush.msra.mxu0 %v1211
        %1255 = vmatmul.f32.gmra.mxu0 %v1217
        %v1256 = vpop.f32.mrf.mxu0
        %v1257 = vadd.f32 0.0, %v1256
        %1258 = vdwg.mxu0
        %v1260 = vsel %vm1215, %v1201, 0
        %1262 = vmatpush.msra.mxu0 0.0
        %1263 = vmatpush.msra.mxu0 0.0
        %1264 = vmatpush.msra.mxu0 0.0
        %1265 = vmatpush.msra.mxu0 0.0
        %1266 = vmatpush.msra.mxu0 0.0
        %1267 = vmatpush.msra.mxu0 0.0
        %1268 = vmatpush.msra.mxu0 0.0
        %1269 = vmatpush.msra.mxu0 0.0
        %1270 = vmatpush.msra.mxu0 0.0
        %1271 = vmatpush.msra.mxu0 0.0
        %1272 = vmatpush.msra.mxu0 0.0
        %1273 = vmatpush.msra.mxu0 0.0
        %1274 = vmatpush.msra.mxu0 0.0
        %1275 = vmatpush.msra.mxu0 0.0
        %1276 = vmatpush.msra.mxu0 0.0
        %1277 = vmatpush.msra.mxu0 %v1202
        %1278 = vmatmul.f32.gmra.mxu0 %v1260
        %v1279 = vpop.f32.mrf.mxu0
        %v1280 = vadd.f32 %v1237, %v1279
        %1281 = vdwg.mxu0
        %1282 = vmatpush.msra.mxu0 0.0
        %1283 = vmatpush.msra.mxu0 0.0
        %1284 = vmatpush.msra.mxu0 0.0
        %1285 = vmatpush.msra.mxu0 0.0
        %1286 = vmatpush.msra.mxu0 0.0
        %1287 = vmatpush.msra.mxu0 0.0
        %1288 = vmatpush.msra.mxu0 0.0
        %1289 = vmatpush.msra.mxu0 0.0
        %1290 = vmatpush.msra.mxu0 0.0
        %1291 = vmatpush.msra.mxu0 0.0
        %1292 = vmatpush.msra.mxu0 0.0
        %1293 = vmatpush.msra.mxu0 0.0
        %1294 = vmatpush.msra.mxu0 0.0
        %1295 = vmatpush.msra.mxu0 0.0
        %1296 = vmatpush.msra.mxu0 0.0
        %1297 = vmatpush.msra.mxu0 %v1203
        %1298 = vmatmul.f32.gmra.mxu0 %v1260
        %v1299 = vpop.f32.mrf.mxu0
        %v1300 = vadd.f32 %v1257, %v1299
        %1301 = vdwg.mxu0
        %s1302 = scalar_lea.vmem [#allocation9], 16
        %v1303 = vld [vmem:[%s1302] sm:$0xff]
        %1304 = vrot.lane.b32.xlu0 %v1202, 126
        %v1305 = vpop.permute.xlu0 %1304
        %1306 = vrot.lane.b32.xlu0 %v1203, 126
        %v1307 = vpop.permute.xlu0 %1306
        %v1308 = vsel %vm723, %v1305, %v1307
        %v1312 = vsel %vm1215, %v1303, 0
        %1314 = vmatpush.msra.mxu0 0.0
        %1315 = vmatpush.msra.mxu0 0.0
        %1316 = vmatpush.msra.mxu0 0.0
        %1317 = vmatpush.msra.mxu0 0.0
        %1318 = vmatpush.msra.mxu0 0.0
        %1319 = vmatpush.msra.mxu0 0.0
        %1320 = vmatpush.msra.mxu0 0.0
        %1321 = vmatpush.msra.mxu0 0.0
        %1322 = vmatpush.msra.mxu0 0.0
        %1323 = vmatpush.msra.mxu0 0.0
        %1324 = vmatpush.msra.mxu0 0.0
        %1325 = vmatpush.msra.mxu0 0.0
        %1326 = vmatpush.msra.mxu0 0.0
        %1327 = vmatpush.msra.mxu0 0.0
        %1328 = vmatpush.msra.mxu0 0.0
        %1329 = vmatpush.msra.mxu0 %v1308
        %1330 = vmatmul.f32.gmra.mxu0 %v1312
        %v1331 = vpop.f32.mrf.mxu0
        %v1332 = vadd.f32 0.0, %v1331
        %1333 = vdwg.mxu0
        %1334 = vmatpush.msra.mxu0 0.0
        %1335 = vmatpush.msra.mxu0 0.0
        %1336 = vmatpush.msra.mxu0 0.0
        %1337 = vmatpush.msra.mxu0 0.0
        %1338 = vmatpush.msra.mxu0 0.0
        %1339 = vmatpush.msra.mxu0 0.0
        %1340 = vmatpush.msra.mxu0 0.0
        %1341 = vmatpush.msra.mxu0 0.0
        %1342 = vmatpush.msra.mxu0 0.0
        %1343 = vmatpush.msra.mxu0 0.0
        %1344 = vmatpush.msra.mxu0 0.0
        %1345 = vmatpush.msra.mxu0 0.0
        %1346 = vmatpush.msra.mxu0 0.0
        %1347 = vmatpush.msra.mxu0 0.0
        %1348 = vmatpush.msra.mxu0 0.0
        %1349 = vmatpush.msra.mxu0 %v1307
        %1350 = vmatmul.f32.gmra.mxu0 %v1312
        %v1351 = vpop.f32.mrf.mxu0
        %v1352 = vadd.f32 0.0, %v1351
        %1353 = vdwg.mxu0
        %v1354 = vadd.f32 %v1280, %v1332
        %v1355 = vadd.f32 %v1300, %v1352
        %s1356 = scalar_lea.vmem [#allocation9], 24
        %v1357 = vld [vmem:[%s1356] sm:$0xff]
        %1358 = vrot.lane.b32.xlu0 %v1202, 112
        %v1359 = vpop.permute.xlu0 %1358
        %1360 = vrot.lane.b32.xlu0 %v1203, 112
        %v1361 = vpop.permute.xlu0 %1360
        %v1362 = vsel %vm785, %v1359, %v1361
        %v1366 = vsel %vm1215, %v1357, 0
        %1368 = vmatpush.msra.mxu0 0.0
        %1369 = vmatpush.msra.mxu0 0.0
        %1370 = vmatpush.msra.mxu0 0.0
        %1371 = vmatpush.msra.mxu0 0.0
        %1372 = vmatpush.msra.mxu0 0.0
        %1373 = vmatpush.msra.mxu0 0.0
        %1374 = vmatpush.msra.mxu0 0.0
        %1375 = vmatpush.msra.mxu0 0.0
        %1376 = vmatpush.msra.mxu0 0.0
        %1377 = vmatpush.msra.mxu0 0.0
        %1378 = vmatpush.msra.mxu0 0.0
        %1379 = vmatpush.msra.mxu0 0.0
        %1380 = vmatpush.msra.mxu0 0.0
        %1381 = vmatpush.msra.mxu0 0.0
        %1382 = vmatpush.msra.mxu0 0.0
        %1383 = vmatpush.msra.mxu0 %v1362
        %1384 = vmatmul.f32.gmra.mxu0 %v1366
        %v1385 = vpop.f32.mrf.mxu0
        %v1386 = vadd.f32 0.0, %v1385
        %1387 = vdwg.mxu0
        %1388 = vmatpush.msra.mxu0 0.0
        %1389 = vmatpush.msra.mxu0 0.0
        %1390 = vmatpush.msra.mxu0 0.0
        %1391 = vmatpush.msra.mxu0 0.0
        %1392 = vmatpush.msra.mxu0 0.0
        %1393 = vmatpush.msra.mxu0 0.0
        %1394 = vmatpush.msra.mxu0 0.0
        %1395 = vmatpush.msra.mxu0 0.0
        %1396 = vmatpush.msra.mxu0 0.0
        %1397 = vmatpush.msra.mxu0 0.0
        %1398 = vmatpush.msra.mxu0 0.0
        %1399 = vmatpush.msra.mxu0 0.0
        %1400 = vmatpush.msra.mxu0 0.0
        %1401 = vmatpush.msra.mxu0 0.0
        %1402 = vmatpush.msra.mxu0 0.0
        %1403 = vmatpush.msra.mxu0 %v1361
        %1404 = vmatmul.f32.gmra.mxu0 %v1366
        %v1405 = vpop.f32.mrf.mxu0
        %v1406 = vadd.f32 0.0, %v1405
        %1407 = vdwg.mxu0
        %v1408 = vadd.f32 %v1354, %v1386
        %v1409 = vadd.f32 %v1355, %v1406
        %s1410 = scalar_lea.vmem [#allocation9], 32
        %v1411 = vld [vmem:[%s1410] sm:$0xff]
        %1412 = vrot.lane.b32.xlu0 %v1202, 111
        %v1413 = vpop.permute.xlu0 %1412
        %1414 = vrot.lane.b32.xlu0 %v1203, 111
        %v1415 = vpop.permute.xlu0 %1414
        %v1416 = vsel %vm863, %v1413, %v1415
        %v1420 = vsel %vm1215, %v1411, 0
        %1422 = vmatpush.msra.mxu0 0.0
        %1423 = vmatpush.msra.mxu0 0.0
        %1424 = vmatpush.msra.mxu0 0.0
        %1425 = vmatpush.msra.mxu0 0.0
        %1426 = vmatpush.msra.mxu0 0.0
        %1427 = vmatpush.msra.mxu0 0.0
        %1428 = vmatpush.msra.mxu0 0.0
        %1429 = vmatpush.msra.mxu0 0.0
        %1430 = vmatpush.msra.mxu0 0.0
        %1431 = vmatpush.msra.mxu0 0.0
        %1432 = vmatpush.msra.mxu0 0.0
        %1433 = vmatpush.msra.mxu0 0.0
        %1434 = vmatpush.msra.mxu0 0.0
        %1435 = vmatpush.msra.mxu0 0.0
        %1436 = vmatpush.msra.mxu0 0.0
        %1437 = vmatpush.msra.mxu0 %v1416
        %1438 = vmatmul.f32.gmra.mxu0 %v1420
        %v1439 = vpop.f32.mrf.mxu0
        %v1440 = vadd.f32 0.0, %v1439
        %1441 = vdwg.mxu0
        %1442 = vmatpush.msra.mxu0 0.0
        %1443 = vmatpush.msra.mxu0 0.0
        %1444 = vmatpush.msra.mxu0 0.0
        %1445 = vmatpush.msra.mxu0 0.0
        %1446 = vmatpush.msra.mxu0 0.0
        %1447 = vmatpush.msra.mxu0 0.0
        %1448 = vmatpush.msra.mxu0 0.0
        %1449 = vmatpush.msra.mxu0 0.0
        %1450 = vmatpush.msra.mxu0 0.0
        %1451 = vmatpush.msra.mxu0 0.0
        %1452 = vmatpush.msra.mxu0 0.0
        %1453 = vmatpush.msra.mxu0 0.0
        %1454 = vmatpush.msra.mxu0 0.0
        %1455 = vmatpush.msra.mxu0 0.0
        %1456 = vmatpush.msra.mxu0 0.0
        %1457 = vmatpush.msra.mxu0 %v1415
        %1458 = vmatmul.f32.gmra.mxu0 %v1420
        %v1459 = vpop.f32.mrf.mxu0
        %v1460 = vadd.f32 0.0, %v1459
        %1461 = vdwg.mxu0
        %v1462 = vadd.f32 %v1408, %v1440
        %v1463 = vadd.f32 %v1409, %v1460
        %s1464 = scalar_lea.vmem [#allocation9], 40
        %v1465 = vld [vmem:[%s1464] sm:$0xff]
        %1466 = vrot.lane.b32.xlu0 %v1202, 110
        %v1467 = vpop.permute.xlu0 %1466
        %1468 = vrot.lane.b32.xlu0 %v1203, 110
        %v1469 = vpop.permute.xlu0 %1468
        %v1470 = vsel %vm931, %v1467, %v1469
        %v1474 = vsel %vm1215, %v1465, 0
        %1476 = vmatpush.msra.mxu0 0.0
        %1477 = vmatpush.msra.mxu0 0.0
        %1478 = vmatpush.msra.mxu0 0.0
        %1479 = vmatpush.msra.mxu0 0.0
        %1480 = vmatpush.msra.mxu0 0.0
        %1481 = vmatpush.msra.mxu0 0.0
        %1482 = vmatpush.msra.mxu0 0.0
        %1483 = vmatpush.msra.mxu0 0.0
        %1484 = vmatpush.msra.mxu0 0.0
        %1485 = vmatpush.msra.mxu0 0.0
        %1486 = vmatpush.msra.mxu0 0.0
        %1487 = vmatpush.msra.mxu0 0.0
        %1488 = vmatpush.msra.mxu0 0.0
        %1489 = vmatpush.msra.mxu0 0.0
        %1490 = vmatpush.msra.mxu0 0.0
        %1491 = vmatpush.msra.mxu0 %v1470
        %1492 = vmatmul.f32.gmra.mxu0 %v1474
        %v1493 = vpop.f32.mrf.mxu0
        %v1494 = vadd.f32 0.0, %v1493
        %1495 = vdwg.mxu0
        %1496 = vmatpush.msra.mxu0 0.0
        %1497 = vmatpush.msra.mxu0 0.0
        %1498 = vmatpush.msra.mxu0 0.0
        %1499 = vmatpush.msra.mxu0 0.0
        %1500 = vmatpush.msra.mxu0 0.0
        %1501 = vmatpush.msra.mxu0 0.0
        %1502 = vmatpush.msra.mxu0 0.0
        %1503 = vmatpush.msra.mxu0 0.0
        %1504 = vmatpush.msra.mxu0 0.0
        %1505 = vmatpush.msra.mxu0 0.0
        %1506 = vmatpush.msra.mxu0 0.0
        %1507 = vmatpush.msra.mxu0 0.0
        %1508 = vmatpush.msra.mxu0 0.0
        %1509 = vmatpush.msra.mxu0 0.0
        %1510 = vmatpush.msra.mxu0 0.0
        %1511 = vmatpush.msra.mxu0 %v1469
        %1512 = vmatmul.f32.gmra.mxu0 %v1474
        %v1513 = vpop.f32.mrf.mxu0
        %v1514 = vadd.f32 0.0, %v1513
        %1515 = vdwg.mxu0
        %v1516 = vadd.f32 %v1462, %v1494
        %v1517 = vadd.f32 %v1463, %v1514
        %s1518 = scalar_lea.vmem [#allocation9], 48
        %v1519 = vld [vmem:[%s1518] sm:$0xff]
        %1520 = vrot.lane.b32.xlu0 %v1202, 96
        %v1521 = vpop.permute.xlu0 %1520
        %1522 = vrot.lane.b32.xlu0 %v1203, 96
        %v1523 = vpop.permute.xlu0 %1522
        %v1524 = vsel %vm999, %v1521, %v1523
        %v1528 = vsel %vm1215, %v1519, 0
        %1530 = vmatpush.msra.mxu0 0.0
        %1531 = vmatpush.msra.mxu0 0.0
        %1532 = vmatpush.msra.mxu0 0.0
        %1533 = vmatpush.msra.mxu0 0.0
        %1534 = vmatpush.msra.mxu0 0.0
        %1535 = vmatpush.msra.mxu0 0.0
        %1536 = vmatpush.msra.mxu0 0.0
        %1537 = vmatpush.msra.mxu0 0.0
        %1538 = vmatpush.msra.mxu0 0.0
        %1539 = vmatpush.msra.mxu0 0.0
        %1540 = vmatpush.msra.mxu0 0.0
        %1541 = vmatpush.msra.mxu0 0.0
        %1542 = vmatpush.msra.mxu0 0.0
        %1543 = vmatpush.msra.mxu0 0.0
        %1544 = vmatpush.msra.mxu0 0.0
        %1545 = vmatpush.msra.mxu0 %v1524
        %1546 = vmatmul.f32.gmra.mxu0 %v1528
        %v1547 = vpop.f32.mrf.mxu0
        %v1548 = vadd.f32 0.0, %v1547
        %1549 = vdwg.mxu0
        %1550 = vmatpush.msra.mxu0 0.0
        %1551 = vmatpush.msra.mxu0 0.0
        %1552 = vmatpush.msra.mxu0 0.0
        %1553 = vmatpush.msra.mxu0 0.0
        %1554 = vmatpush.msra.mxu0 0.0
        %1555 = vmatpush.msra.mxu0 0.0
        %1556 = vmatpush.msra.mxu0 0.0
        %1557 = vmatpush.msra.mxu0 0.0
        %1558 = vmatpush.msra.mxu0 0.0
        %1559 = vmatpush.msra.mxu0 0.0
        %1560 = vmatpush.msra.mxu0 0.0
        %1561 = vmatpush.msra.mxu0 0.0
        %1562 = vmatpush.msra.mxu0 0.0
        %1563 = vmatpush.msra.mxu0 0.0
        %1564 = vmatpush.msra.mxu0 0.0
        %1565 = vmatpush.msra.mxu0 %v1523
        %1566 = vmatmul.f32.gmra.mxu0 %v1528
        %v1567 = vpop.f32.mrf.mxu0
        %v1568 = vadd.f32 0.0, %v1567
        %1569 = vdwg.mxu0
        %v1570 = vadd.f32 %v1516, %v1548
        %v1571 = vadd.f32 %v1517, %v1568
        %s1572 = scalar_lea.vmem [#allocation9], 56
        %v1573 = vld [vmem:[%s1572] sm:$0xff]
        %1574 = vrot.lane.b32.xlu0 %v1202, 95
        %v1575 = vpop.permute.xlu0 %1574
        %1576 = vrot.lane.b32.xlu0 %v1203, 95
        %v1577 = vpop.permute.xlu0 %1576
        %v1578 = vsel %vm1067, %v1575, %v1577
        %v1582 = vsel %vm1215, %v1573, 0
        %1584 = vmatpush.msra.mxu0 0.0
        %1585 = vmatpush.msra.mxu0 0.0
        %1586 = vmatpush.msra.mxu0 0.0
        %1587 = vmatpush.msra.mxu0 0.0
        %1588 = vmatpush.msra.mxu0 0.0
        %1589 = vmatpush.msra.mxu0 0.0
        %1590 = vmatpush.msra.mxu0 0.0
        %1591 = vmatpush.msra.mxu0 0.0
        %1592 = vmatpush.msra.mxu0 0.0
        %1593 = vmatpush.msra.mxu0 0.0
        %1594 = vmatpush.msra.mxu0 0.0
        %1595 = vmatpush.msra.mxu0 0.0
        %1596 = vmatpush.msra.mxu0 0.0
        %1597 = vmatpush.msra.mxu0 0.0
        %1598 = vmatpush.msra.mxu0 0.0
        %1599 = vmatpush.msra.mxu0 %v1578
        %1600 = vmatmul.f32.gmra.mxu0 %v1582
        %v1601 = vpop.f32.mrf.mxu0
        %v1602 = vadd.f32 0.0, %v1601
        %1603 = vdwg.mxu0
        %1604 = vmatpush.msra.mxu0 0.0
        %1605 = vmatpush.msra.mxu0 0.0
        %1606 = vmatpush.msra.mxu0 0.0
        %1607 = vmatpush.msra.mxu0 0.0
        %1608 = vmatpush.msra.mxu0 0.0
        %1609 = vmatpush.msra.mxu0 0.0
        %1610 = vmatpush.msra.mxu0 0.0
        %1611 = vmatpush.msra.mxu0 0.0
        %1612 = vmatpush.msra.mxu0 0.0
        %1613 = vmatpush.msra.mxu0 0.0
        %1614 = vmatpush.msra.mxu0 0.0
        %1615 = vmatpush.msra.mxu0 0.0
        %1616 = vmatpush.msra.mxu0 0.0
        %1617 = vmatpush.msra.mxu0 0.0
        %1618 = vmatpush.msra.mxu0 0.0
        %1619 = vmatpush.msra.mxu0 %v1577
        %1620 = vmatmul.f32.gmra.mxu0 %v1582
        %v1621 = vpop.f32.mrf.mxu0
        %v1622 = vadd.f32 0.0, %v1621
        %1623 = vdwg.mxu0
        %v1624 = vadd.f32 %v1570, %v1602
        %v1625 = vadd.f32 %v1571, %v1622
        %s1626 = scalar_lea.vmem [#allocation9], 64
        %v1627 = vld [vmem:[%s1626] sm:$0xff]
        %1628 = vrot.lane.b32.xlu0 %v1202, 94
        %v1629 = vpop.permute.xlu0 %1628
        %1630 = vrot.lane.b32.xlu0 %v1203, 94
        %v1631 = vpop.permute.xlu0 %1630
        %v1632 = vsel %vm1135, %v1629, %v1631
        %v1636 = vsel %vm1215, %v1627, 0
        %1638 = vmatpush.msra.mxu0 0.0
        %1639 = vmatpush.msra.mxu0 0.0
        %1640 = vmatpush.msra.mxu0 0.0
        %1641 = vmatpush.msra.mxu0 0.0
        %1642 = vmatpush.msra.mxu0 0.0
        %1643 = vmatpush.msra.mxu0 0.0
        %1644 = vmatpush.msra.mxu0 0.0
        %1645 = vmatpush.msra.mxu0 0.0
        %1646 = vmatpush.msra.mxu0 0.0
        %1647 = vmatpush.msra.mxu0 0.0
        %1648 = vmatpush.msra.mxu0 0.0
        %1649 = vmatpush.msra.mxu0 0.0
        %1650 = vmatpush.msra.mxu0 0.0
        %1651 = vmatpush.msra.mxu0 0.0
        %1652 = vmatpush.msra.mxu0 0.0
        %1653 = vmatpush.msra.mxu0 %v1632
        %1654 = vmatmul.f32.gmra.mxu0 %v1636
        %v1655 = vpop.f32.mrf.mxu0
        %v1656 = vadd.f32 0.0, %v1655
        %1657 = vdwg.mxu0
        %1658 = vmatpush.msra.mxu0 0.0
        %1659 = vmatpush.msra.mxu0 0.0
        %1660 = vmatpush.msra.mxu0 0.0
        %1661 = vmatpush.msra.mxu0 0.0
        %1662 = vmatpush.msra.mxu0 0.0
        %1663 = vmatpush.msra.mxu0 0.0
        %1664 = vmatpush.msra.mxu0 0.0
        %1665 = vmatpush.msra.mxu0 0.0
        %1666 = vmatpush.msra.mxu0 0.0
        %1667 = vmatpush.msra.mxu0 0.0
        %1668 = vmatpush.msra.mxu0 0.0
        %1669 = vmatpush.msra.mxu0 0.0
        %1670 = vmatpush.msra.mxu0 0.0
        %1671 = vmatpush.msra.mxu0 0.0
        %1672 = vmatpush.msra.mxu0 0.0
        %1673 = vmatpush.msra.mxu0 %v1631
        %1674 = vmatmul.f32.gmra.mxu0 %v1636
        %v1675 = vpop.f32.mrf.mxu0
        %v1676 = vadd.f32 0.0, %v1675
        %1677 = vdwg.mxu0
        %v1678 = vadd.f32 %v1624, %v1656
        %v1679 = vadd.f32 %v1625, %v1676
        %v1680 = vld [vmem:[%s8] sm:$0xff]
        %1682 = vset.pattern.permute.xlu0 0
        %1683 = vperm.xlu0 %1682, %v1680
        %v1684 = vpop.permute.xlu0 %1683
        %v1686 = vadd.f32 %v1678, %v1684
        %v1687 = vadd.f32 %v1679, %v1684
        %v1688 = vmax.f32 %v1686, 0.0
        %v1689 = vmax.f32 %v1687, 0.0
        %1690 = vst [vmem:[%s398] sm:$0xff] %v1688
        %vm1691 = vcmask 523264
        %1692 = vst.msk [vmem:[%s398 + $0x8] sm:$0xff] %vm1691, %v1689
        %s1693 = sand.u32 %s234, 1
        %s1694 = scalar_lea.sflag [#allocation6], %s1693
        %s1695 = sand.u32 %s234, 1
        %s1696 = smul.addr %s1695, 16
        %s1697 = scalar_lea.vmem [#allocation10], %s1696
        // Predicated region
        $region69: #{tpu_custom_call.1} parent=55 // pred_check
          %p1698 = pneg %p244
        $region70: #{tpu_custom_call.1} parent=55 // pred_check_branch
          %1700 = sbr.rel (%p1698) target = $region72
        $region71: #{tpu_custom_call.1} parent=55 // pred_region
          %1702 = vsyncadd %s1694, 0
          %s1703 = smul.addr %s27, 2
          %s1704 = smul.addr %s1703, 8
          %s1705 = scalar_lea.hbm %s9, %s1704
          %s1707 = sshll.u32 %s1697, 4
          %s1708 = int_to_ptr.vmem [resolvable:$true] %s1707
          %s1709 = sshll.u32 %s1705, 4
          %s1710 = int_to_ptr.hbm [resolvable:$true] %s1709
          %1712 = dma.vmem_to_hbm [thread:$0]  %s1708, 256, %s1710, %s1694
        $region72: #{tpu_custom_call.1} parent=55 // pred_fallthru
          _
      $region56: #{tpu_custom_call.1} parent=5 // pred_fallthru
        _
      %p1713 = scmp.le.s32.totalorder 2, %s22
      // Predicated region
      $region73: #{tpu_custom_call.1} parent=5 // pred_check
        %p1714 = pneg %p1713
      $region74: #{tpu_custom_call.1} parent=5 // pred_check_branch
        %1716 = sbr.rel (%p1714) target = $region76
      $region75: #{tpu_custom_call.1} parent=5 // pred_region
        %s1717 = ssub.s32 %s22, 2
        // Predicated region
        $region77: #{tpu_custom_call.1} parent=75 // pred_check
          %p1718 = pneg %p250
        $region78: #{tpu_custom_call.1} parent=75 // pred_check_branch
          %1720 = sbr.rel (%p1718) target = $region80
        $region79: #{tpu_custom_call.1} parent=75 // pred_region
          %s1721 = sand.u32 %s235, 1
          %s1722 = scalar_lea.sflag [#allocation6], %s1721
          %s1723 = sand.u32 %s235, 1
          %s1724 = smul.addr %s1723, 16
          %s1725 = scalar_lea.vmem [#allocation10], %s1724
          %1727 = dma.done %s1722, 256
        $region80: #{tpu_custom_call.1} parent=75 // pred_fallthru
          _
      $region76: #{tpu_custom_call.1} parent=5 // pred_fallthru
        _
    $region6: #{tpu_custom_call.1} parent=1 // loop_footer
      %s26 = sadd.s32 1, %s22
    $region7: #{tpu_custom_call.1} parent=1 // loop_footer_branch
      %21 = sbr.rel target = $region3
    $region8: #{tpu_custom_call.1} parent=1 // loop_exit
      _
    %1728 = vsyncpa [#allocation5], 1
    %s1729 = scalar_lea.sflag [#allocation5], 1
    %1730 = vsyncpa %s1729, 1
    %1731 = vsyncpa [#allocation8], 1
    %1732 = vsyncpa [#allocation6], 1
    %s1733 = scalar_lea.sflag [#allocation6], 1
    %1734 = vsyncpa %s1733, 1

</llo_original>
